<compile_context>
chip_gen: v7x
topology: tpu7x:2x2x1
jax: 0.10.0
libtpu: 0.0.40
codegen_flags: <defaults>
</compile_context>

<pallas_src>
import functools

import jax
import jax.numpy as jnp
from jax.experimental import pallas as pl
from jax.experimental.pallas import tpu as pltpu


def _round_up(x, m):
    return (x + m - 1) // m * m


def dbn_kernel(x_ref, w1_ref, b1_ref, w2_ref, b2_ref, w3_ref, b3_ref, o_ref):
    # Layer 1: Linear (bf16 in, f32 accumulate) + bias + ReLU in f32.
    h1 = jnp.dot(x_ref[...], w1_ref[...], preferred_element_type=jnp.float32)
    h1 = jnp.maximum(h1 + b1_ref[...], 0.0).astype(jnp.bfloat16)
    # Layer 2: Linear + bias + ReLU.
    h2 = jnp.dot(h1, w2_ref[...], preferred_element_type=jnp.float32)
    h2 = jnp.maximum(h2 + b2_ref[...], 0.0).astype(jnp.bfloat16)
    # Classifier head (lane-dense, zero-padded to 128 output columns).
    out = jnp.dot(h2, w3_ref[...], preferred_element_type=jnp.float32)
    o_ref[...] = (out + b3_ref[...]).astype(o_ref.dtype)


def dbn_forward(x, params, *, tm=256):
    """x: (B, ...) any trailing shape; flattened to (B, input_dim) like x.view(B, -1).

    params: [(w1, b1), (w2, b2), (w3, b3)] with w_i shaped (in, out), b_i (1, out).
    """
    B = x.shape[0]
    x2d = x.reshape(B, -1).astype(jnp.float32)
    K = x2d.shape[1]

    (w1, b1), (w2, b2), (w3, b3) = params
    num_classes = w3.shape[1]

    # --- Pad shapes for lane-dense MXU work -----------------------------------
    K_pad = _round_up(K, 128)                      # 800 -> 896
    N3_pad = _round_up(max(num_classes, 1), 128)   # 2   -> 128

    # Batch tile: multiple of 8 sublanes, no larger than the padded batch.
    B_pad8 = _round_up(B, 8)
    tm = _round_up(min(tm, B_pad8), 8)
    B_pad = _round_up(B, tm)

    # Activations fed to the MXU in bf16 (f32 accumulate inside the kernel).
    x_p = jnp.pad(x2d, ((0, B_pad - B), (0, K_pad - K))).astype(jnp.bfloat16)

    # Weights in bf16; biases stay f32 for the VPU add.
    w1_p = jnp.pad(w1, ((0, K_pad - K), (0, 0))).astype(jnp.bfloat16)
    b1_p = b1.astype(jnp.float32)
    w2_p = w2.astype(jnp.bfloat16)
    b2_p = b2.astype(jnp.float32)
    w3_p = jnp.pad(w3, ((0, 0), (0, N3_pad - num_classes))).astype(jnp.bfloat16)
    b3_p = jnp.pad(b3, ((0, 0), (0, N3_pad - num_classes))).astype(jnp.float32)

    H1 = w1_p.shape[1]
    H2 = w2_p.shape[1]

    grid = (B_pad // tm,)

    # Weights/biases use a constant index_map -> fetched once, VMEM-resident
    # across the batch loop; x/out are tiled over the batch axis.
    resident = lambda shape: pl.BlockSpec(shape, lambda i: (0, 0))

    out_p = pl.pallas_call(
        dbn_kernel,
        grid=grid,
        in_specs=[
            pl.BlockSpec((tm, K_pad), lambda i: (i, 0)),        # x tile
            resident((K_pad, H1)), resident((1, H1)),           # w1, b1
            resident((H1, H2)), resident((1, H2)),              # w2, b2
            resident((H2, N3_pad)), resident((1, N3_pad)),      # w3, b3
        ],
        out_specs=pl.BlockSpec((tm, N3_pad), lambda i: (i, 0)),
        out_shape=jax.ShapeDtypeStruct((B_pad, N3_pad), jnp.float32),
        compiler_params=pltpu.CompilerParams(
            dimension_semantics=("parallel",)),
    )(x_p, w1_p, b1_p, w2_p, b2_p, w3_p, b3_p)

    return out_p[:B, :num_classes]


def init_dbn_params(key, input_dim, hidden_dims, num_classes):
    """Deterministic init mimicking nn.Linear's uniform(-1/sqrt(fan_in), 1/sqrt(fan_in)).
    Weights stored as (in_features, out_features) for direct x @ W in the kernel."""
    dims = [input_dim] + list(hidden_dims) + [num_classes]
    params = []
    for i in range(len(dims) - 1):
        fan_in, fan_out = dims[i], dims[i + 1]
        key, kw, kb = jax.random.split(key, 3)
        bound = 1.0 / jnp.sqrt(jnp.float32(fan_in))
        w = jax.random.uniform(kw, (fan_in, fan_out), jnp.float32, -bound, bound)
        b = jax.random.uniform(kb, (1, fan_out), jnp.float32, -bound, bound)
        params.append((w, b))
    return params


def dbn_reference(x, params):
    """Pure-JAX reference using the SAME bf16 casts as the kernel (f32 math)."""
    B = x.shape[0]
    h = x.reshape(B, -1).astype(jnp.float32)
    (w1, b1), (w2, b2), (w3, b3) = params

    def bf(a):
        return a.astype(jnp.bfloat16).astype(jnp.float32)

    h = bf(h)
    h = jnp.maximum(h @ bf(w1) + b1, 0.0)
    h = jnp.maximum(bf(h) @ bf(w2) + b2, 0.0)
    return bf(h) @ bf(w3) + b3


if __name__ == "__main__":
    # Shapes consistent with the module:
    #   max_sequence_length = 8  ->  input_dim = 100 * 8 = 800
    #   hidden_dims = [512, 256], num_classes = 2
    # Small batch (32) with tm=16 so the batch grid axis has 2 tiles.
    max_sequence_length = 8
    input_dim = 100 * max_sequence_length
    hidden_dims = [512, 256]
    num_classes = 2
    batch = 32

    key = jax.random.PRNGKey(0)
    key, kx = jax.random.split(key)
    # Input shaped (B, 100, max_seq_len); forward flattens it like x.view(B, -1).
    x = jax.random.normal(kx, (batch, 100, max_sequence_length), jnp.float32)

    params = init_dbn_params(key, input_dim, hidden_dims, num_classes)

    forward = jax.jit(functools.partial(dbn_forward, tm=16))
    out = forward(x, params)
    out = jax.block_until_ready(out)

    ref = dbn_reference(x, params)
    assert out.shape == (batch, num_classes)
    # bf16 MXU inputs: compare against bf16-cast reference with modest tolerance.
    assert jnp.allclose(out, ref, atol=1e-2, rtol=1e-2), "mismatch vs reference"

    print("KERNEL_OK")
</pallas_src>

<mosaic_0001>
module attributes {stable_mosaic.version = 11 : i64} {
  func.func @dbn_kernel(%arg0: i32, %arg1: memref<16x896xbf16, #tpu.memory_space<vmem>>, %arg2: memref<896x512xbf16, #tpu.memory_space<vmem>>, %arg3: memref<1x512xf32, #tpu.memory_space<vmem>>, %arg4: memref<512x256xbf16, #tpu.memory_space<vmem>>, %arg5: memref<1x256xf32, #tpu.memory_space<vmem>>, %arg6: memref<256x128xbf16, #tpu.memory_space<vmem>>, %arg7: memref<1x128xf32, #tpu.memory_space<vmem>>, %arg8: memref<16x128xf32, #tpu.memory_space<vmem>>) attributes {dimension_semantics = [#tpu.dimension_semantics<parallel>], iteration_bounds = array<i64: 2>, scalar_prefetch = 0 : i64, scratch_operands = 0 : i64, tpu.core_type = #tpu.core_type<tc>, window_params = [{transform_indices = @transform_0, window_bounds = array<i64: 16, 896>}, {pipeline_mode = #tpu.pipeline_mode<synchronous>, transform_indices = @transform_1, window_bounds = array<i64: 896, 512>}, {pipeline_mode = #tpu.pipeline_mode<synchronous>, transform_indices = @transform_2, window_bounds = array<i64: 1, 512>}, {pipeline_mode = #tpu.pipeline_mode<synchronous>, transform_indices = @transform_3, window_bounds = array<i64: 512, 256>}, {pipeline_mode = #tpu.pipeline_mode<synchronous>, transform_indices = @transform_4, window_bounds = array<i64: 1, 256>}, {pipeline_mode = #tpu.pipeline_mode<synchronous>, transform_indices = @transform_5, window_bounds = array<i64: 256, 128>}, {pipeline_mode = #tpu.pipeline_mode<synchronous>, transform_indices = @transform_6, window_bounds = array<i64: 1, 128>}, {transform_indices = @transform_7, window_bounds = array<i64: 16, 128>}]} {
    %c0 = arith.constant 0 : index
    %c0_0 = arith.constant 0 : index
    %0 = vector.load %arg1[%c0, %c0_0] : memref<16x896xbf16, #tpu.memory_space<vmem>>, vector<16x896xbf16>
    %c0_1 = arith.constant 0 : index
    %c0_2 = arith.constant 0 : index
    %1 = vector.load %arg2[%c0_1, %c0_2] : memref<896x512xbf16, #tpu.memory_space<vmem>>, vector<896x512xbf16>
    %cst = arith.constant dense<0.000000e+00> : vector<16x512xf32>
    %2 = tpu.matmul %0, %1, %cst {dimension_numbers = #tpu.dot_dimension_numbers<[1], [0], [0], [1], [0, 0, 1, 1], [], []>} : vector<16x896xbf16>, vector<896x512xbf16>, vector<16x512xf32> -> vector<16x512xf32>
    %c0_3 = arith.constant 0 : index
    %c0_4 = arith.constant 0 : index
    %3 = vector.load %arg3[%c0_3, %c0_4] : memref<1x512xf32, #tpu.memory_space<vmem>>, vector<1x512xf32>
    %4 = vector.broadcast %3 : vector<1x512xf32> to vector<16x512xf32>
    %5 = arith.addf %2, %4 : vector<16x512xf32>
    %cst_5 = arith.constant 0.000000e+00 : f32
    %6 = vector.broadcast %cst_5 : f32 to vector<16x512xf32>
    %7 = arith.maximumf %5, %6 : vector<16x512xf32>
    %8 = arith.truncf %7 : vector<16x512xf32> to vector<16x512xbf16>
    %c0_6 = arith.constant 0 : index
    %c0_7 = arith.constant 0 : index
    %9 = vector.load %arg4[%c0_6, %c0_7] : memref<512x256xbf16, #tpu.memory_space<vmem>>, vector<512x256xbf16>
    %cst_8 = arith.constant dense<0.000000e+00> : vector<16x256xf32>
    %10 = tpu.matmul %8, %9, %cst_8 {dimension_numbers = #tpu.dot_dimension_numbers<[1], [0], [0], [1], [0, 0, 1, 1], [], []>} : vector<16x512xbf16>, vector<512x256xbf16>, vector<16x256xf32> -> vector<16x256xf32>
    %c0_9 = arith.constant 0 : index
    %c0_10 = arith.constant 0 : index
    %11 = vector.load %arg5[%c0_9, %c0_10] : memref<1x256xf32, #tpu.memory_space<vmem>>, vector<1x256xf32>
    %12 = vector.broadcast %11 : vector<1x256xf32> to vector<16x256xf32>
    %13 = arith.addf %10, %12 : vector<16x256xf32>
    %cst_11 = arith.constant 0.000000e+00 : f32
    %14 = vector.broadcast %cst_11 : f32 to vector<16x256xf32>
    %15 = arith.maximumf %13, %14 : vector<16x256xf32>
    %16 = arith.truncf %15 : vector<16x256xf32> to vector<16x256xbf16>
    %c0_12 = arith.constant 0 : index
    %c0_13 = arith.constant 0 : index
    %17 = vector.load %arg6[%c0_12, %c0_13] : memref<256x128xbf16, #tpu.memory_space<vmem>>, vector<256x128xbf16>
    %cst_14 = arith.constant dense<0.000000e+00> : vector<16x128xf32>
    %18 = tpu.matmul %16, %17, %cst_14 {dimension_numbers = #tpu.dot_dimension_numbers<[1], [0], [0], [1], [0, 0, 1, 1], [], []>} : vector<16x256xbf16>, vector<256x128xbf16>, vector<16x128xf32> -> vector<16x128xf32>
    %c0_15 = arith.constant 0 : index
    %c0_16 = arith.constant 0 : index
    %19 = vector.load %arg7[%c0_15, %c0_16] : memref<1x128xf32, #tpu.memory_space<vmem>>, vector<1x128xf32>
    %20 = vector.broadcast %19 : vector<1x128xf32> to vector<16x128xf32>
    %21 = arith.addf %18, %20 : vector<16x128xf32>
    %c0_17 = arith.constant 0 : index
    %c0_18 = arith.constant 0 : index
    %22 = vector.load %arg8[%c0_17, %c0_18] : memref<16x128xf32, #tpu.memory_space<vmem>>, vector<16x128xf32>
    tpu.vector_store %arg8[%c0_17, %c0_18], %21 {strides = array<i32>} : memref<16x128xf32, #tpu.memory_space<vmem>>, vector<16x128xf32>,
    return
  }
  func.func @transform_0(%arg0: i32) -> (i32, i32) {
    %c0_i32 = arith.constant 0 : i32
    %c0_i32_0 = arith.constant 0 : i32
    return %arg0, %c0_i32 : i32, i32
  }
  func.func @transform_1(%arg0: i32) -> (i32, i32) {
    %c0_i32 = arith.constant 0 : i32
    %c0_i32_0 = arith.constant 0 : i32
    %c0_i32_1 = arith.constant 0 : i32
    return %c0_i32, %c0_i32_0 : i32, i32
  }
  func.func @transform_2(%arg0: i32) -> (i32, i32) {
    %c0_i32 = arith.constant 0 : i32
    %c0_i32_0 = arith.constant 0 : i32
    %c0_i32_1 = arith.constant 0 : i32
    return %c0_i32, %c0_i32_0 : i32, i32
  }
  func.func @transform_3(%arg0: i32) -> (i32, i32) {
    %c0_i32 = arith.constant 0 : i32
    %c0_i32_0 = arith.constant 0 : i32
    %c0_i32_1 = arith.constant 0 : i32
    return %c0_i32, %c0_i32_0 : i32, i32
  }
  func.func @transform_4(%arg0: i32) -> (i32, i32) {
    %c0_i32 = arith.constant 0 : i32
    %c0_i32_0 = arith.constant 0 : i32
    %c0_i32_1 = arith.constant 0 : i32
    return %c0_i32, %c0_i32_0 : i32, i32
  }
  func.func @transform_5(%arg0: i32) -> (i32, i32) {
    %c0_i32 = arith.constant 0 : i32
    %c0_i32_0 = arith.constant 0 : i32
    %c0_i32_1 = arith.constant 0 : i32
    return %c0_i32, %c0_i32_0 : i32, i32
  }
  func.func @transform_6(%arg0: i32) -> (i32, i32) {
    %c0_i32 = arith.constant 0 : i32
    %c0_i32_0 = arith.constant 0 : i32
    %c0_i32_1 = arith.constant 0 : i32
    return %c0_i32, %c0_i32_0 : i32, i32
  }
  func.func @transform_7(%arg0: i32) -> (i32, i32) {
    %c0_i32 = arith.constant 0 : i32
    %c0_i32_0 = arith.constant 0 : i32
    return %arg0, %c0_i32 : i32, i32
  }
}

</mosaic_0001>

<llo_original>
// kernel: dbn_forward.1
$region0: #{dbn_forward.1}
  #allocation0 [shape = 'u32[]', space=smem, size = 0x4, offset = 0x4, fixed_abs, tag = 'smem constant byte address 0x4 - core index']
  #allocation1 [shape = 'u32[144,128]{1,0:T(1,128)}', space=vmem, size = 0x12000, scoped, tag = 'internal scratch']
  %s0 = inlined_call_operand.vmem [shape: bf16[32,896], index: 0, kind: input, shape index: {}]
  %s1 = inlined_call_operand.vmem [shape: bf16[896,512], index: 1, kind: input, shape index: {}]
  %s2 = inlined_call_operand.vmem [shape: f32[1,512], index: 2, kind: input, shape index: {}]
  %s3 = inlined_call_operand.vmem [shape: bf16[512,256], index: 3, kind: input, shape index: {}]
  %s4 = inlined_call_operand.vmem [shape: f32[1,256], index: 4, kind: input, shape index: {}]
  %s5 = inlined_call_operand.vmem [shape: bf16[256,128], index: 5, kind: input, shape index: {}]
  %s6 = inlined_call_operand.vmem [shape: f32[1,128], index: 6, kind: input, shape index: {}]
  %s7 = inlined_call_operand.vmem [shape: f32[32,128], index: 7, kind: output, shape index: {}]
  %s8 = sld [smem:[#allocation0]]
  $region61: #{dbn_forward.1} parent=0
    _
  %s10 = ssub.s32 1, %s8
  %s11 = scalar_select 0, %s10, %s8
  loop: start=0, step=1, limit=4
  $region2: #{dbn_forward.1} parent=0 // loop_pre_header
    _
  $region3: #{dbn_forward.1} parent=0 // loop_header
    %s13 = sphi 0, %s17
    %p14 = scmp.ge.s32.totalorder %s13, 4
    %s23 = sphi 0, %s25
    %s26 = sphi 0, %s23
    %s27 = sphi 0, %s26
    %s43 = sphi 0, %s27
    %s47 = sphi 0, %s47
    %s49 = sphi 0, %s47
    %s50 = sphi 0, %s49
    %s64 = sphi 0, %s50
    %s68 = sphi 0, %s68
    %s70 = sphi 0, %s68
    %s71 = sphi 0, %s70
    %s85 = sphi 0, %s71
    %s89 = sphi 0, %s89
    %s91 = sphi 0, %s89
    %s92 = sphi 0, %s91
    %s106 = sphi 0, %s92
    %s110 = sphi 0, %s110
    %s112 = sphi 0, %s110
    %s113 = sphi 0, %s112
    %s127 = sphi 0, %s113
    %s131 = sphi 0, %s131
    %s133 = sphi 0, %s131
    %s134 = sphi 0, %s133
    %s148 = sphi 0, %s134
    %s152 = sphi 0, %s152
    %s154 = sphi 0, %s152
    %s155 = sphi 0, %s154
    %s169 = sphi 0, %s155
    %s175 = sphi 0, %s177
    %s178 = sphi 0, %s175
    %s179 = sphi 0, %s178
    %s195 = sphi 0, %s179
  $region4: #{dbn_forward.1} parent=0 // loop_header_branch
    %16 = sbr.rel (%p14) target = $region8
  $region5: #{dbn_forward.1} parent=0 // loop_body
    %s18 = ssub.s32 %s13, 1
    %s19 = ssub.s32 %s13, 2
    %s20 = sadd.s32 %s13, 1
    %s21 = ssub.s32 %s13, %s20
    %p22 = scmp.eq.s32.totalorder %s21, 0
    %s24 = sadd.s32 %s23, 1
    %s25 = scalar_select %p22, %s23, %s24
    %p28 = pneg %p22
    %p29 = scmp.eq.s32.totalorder %s13, 1
    %p30 = por %p28, %p29
    %p31 = scmp.ne.s32.totalorder %s23, %s26
    %p32 = scmp.eq.s32.totalorder %s13, 0
    %p33 = por %p31, %p32
    %p34 = scmp.ne.s32.totalorder %s23, %s26
    %p35 = scmp.eq.s32.totalorder %s18, 1
    %p36 = por %p34, %p35
    %p37 = scmp.ne.s32.totalorder %s26, %s27
    %p38 = scmp.eq.s32.totalorder %s18, 0
    %p39 = por %p37, %p38
    %p40 = scmp.ne.s32.totalorder %s26, %s27
    %p41 = scmp.eq.s32.totalorder %s19, 1
    %p42 = por %p40, %p41
    %p44 = scmp.ne.s32.totalorder %s27, %s43
    %p45 = scmp.eq.s32.totalorder %s19, 0
    %p46 = por %p44, %p45
    %s48 = sadd.s32 %s47, 1
    %p51 = scmp.eq.s32.totalorder %s13, 1
    %p52 = scmp.ne.s32.totalorder %s47, %s49
    %p53 = scmp.eq.s32.totalorder %s13, 0
    %p54 = por %p52, %p53
    %p55 = scmp.ne.s32.totalorder %s47, %s49
    %p56 = scmp.eq.s32.totalorder %s18, 1
    %p57 = por %p55, %p56
    %p58 = scmp.ne.s32.totalorder %s49, %s50
    %p59 = scmp.eq.s32.totalorder %s18, 0
    %p60 = por %p58, %p59
    %p61 = scmp.ne.s32.totalorder %s49, %s50
    %p62 = scmp.eq.s32.totalorder %s19, 1
    %p63 = por %p61, %p62
    %p65 = scmp.ne.s32.totalorder %s50, %s64
    %p66 = scmp.eq.s32.totalorder %s19, 0
    %p67 = por %p65, %p66
    %s69 = sadd.s32 %s68, 1
    %p72 = scmp.eq.s32.totalorder %s13, 1
    %p73 = scmp.ne.s32.totalorder %s68, %s70
    %p74 = scmp.eq.s32.totalorder %s13, 0
    %p75 = por %p73, %p74
    %p76 = scmp.ne.s32.totalorder %s68, %s70
    %p77 = scmp.eq.s32.totalorder %s18, 1
    %p78 = por %p76, %p77
    %p79 = scmp.ne.s32.totalorder %s70, %s71
    %p80 = scmp.eq.s32.totalorder %s18, 0
    %p81 = por %p79, %p80
    %p82 = scmp.ne.s32.totalorder %s70, %s71
    %p83 = scmp.eq.s32.totalorder %s19, 1
    %p84 = por %p82, %p83
    %p86 = scmp.ne.s32.totalorder %s71, %s85
    %p87 = scmp.eq.s32.totalorder %s19, 0
    %p88 = por %p86, %p87
    %s90 = sadd.s32 %s89, 1
    %p93 = scmp.eq.s32.totalorder %s13, 1
    %p94 = scmp.ne.s32.totalorder %s89, %s91
    %p95 = scmp.eq.s32.totalorder %s13, 0
    %p96 = por %p94, %p95
    %p97 = scmp.ne.s32.totalorder %s89, %s91
    %p98 = scmp.eq.s32.totalorder %s18, 1
    %p99 = por %p97, %p98
    %p100 = scmp.ne.s32.totalorder %s91, %s92
    %p101 = scmp.eq.s32.totalorder %s18, 0
    %p102 = por %p100, %p101
    %p103 = scmp.ne.s32.totalorder %s91, %s92
    %p104 = scmp.eq.s32.totalorder %s19, 1
    %p105 = por %p103, %p104
    %p107 = scmp.ne.s32.totalorder %s92, %s106
    %p108 = scmp.eq.s32.totalorder %s19, 0
    %p109 = por %p107, %p108
    %s111 = sadd.s32 %s110, 1
    %p114 = scmp.eq.s32.totalorder %s13, 1
    %p115 = scmp.ne.s32.totalorder %s110, %s112
    %p116 = scmp.eq.s32.totalorder %s13, 0
    %p117 = por %p115, %p116
    %p118 = scmp.ne.s32.totalorder %s110, %s112
    %p119 = scmp.eq.s32.totalorder %s18, 1
    %p120 = por %p118, %p119
    %p121 = scmp.ne.s32.totalorder %s112, %s113
    %p122 = scmp.eq.s32.totalorder %s18, 0
    %p123 = por %p121, %p122
    %p124 = scmp.ne.s32.totalorder %s112, %s113
    %p125 = scmp.eq.s32.totalorder %s19, 1
    %p126 = por %p124, %p125
    %p128 = scmp.ne.s32.totalorder %s113, %s127
    %p129 = scmp.eq.s32.totalorder %s19, 0
    %p130 = por %p128, %p129
    %s132 = sadd.s32 %s131, 1
    %p135 = scmp.eq.s32.totalorder %s13, 1
    %p136 = scmp.ne.s32.totalorder %s131, %s133
    %p137 = scmp.eq.s32.totalorder %s13, 0
    %p138 = por %p136, %p137
    %p139 = scmp.ne.s32.totalorder %s131, %s133
    %p140 = scmp.eq.s32.totalorder %s18, 1
    %p141 = por %p139, %p140
    %p142 = scmp.ne.s32.totalorder %s133, %s134
    %p143 = scmp.eq.s32.totalorder %s18, 0
    %p144 = por %p142, %p143
    %p145 = scmp.ne.s32.totalorder %s133, %s134
    %p146 = scmp.eq.s32.totalorder %s19, 1
    %p147 = por %p145, %p146
    %p149 = scmp.ne.s32.totalorder %s134, %s148
    %p150 = scmp.eq.s32.totalorder %s19, 0
    %p151 = por %p149, %p150
    %s153 = sadd.s32 %s152, 1
    %p156 = scmp.eq.s32.totalorder %s13, 1
    %p157 = scmp.ne.s32.totalorder %s152, %s154
    %p158 = scmp.eq.s32.totalorder %s13, 0
    %p159 = por %p157, %p158
    %p160 = scmp.ne.s32.totalorder %s152, %s154
    %p161 = scmp.eq.s32.totalorder %s18, 1
    %p162 = por %p160, %p161
    %p163 = scmp.ne.s32.totalorder %s154, %s155
    %p164 = scmp.eq.s32.totalorder %s18, 0
    %p165 = por %p163, %p164
    %p166 = scmp.ne.s32.totalorder %s154, %s155
    %p167 = scmp.eq.s32.totalorder %s19, 1
    %p168 = por %p166, %p167
    %p170 = scmp.ne.s32.totalorder %s155, %s169
    %p171 = scmp.eq.s32.totalorder %s19, 0
    %p172 = por %p170, %p171
    %s173 = ssub.s32 %s13, %s20
    %p174 = scmp.eq.s32.totalorder %s173, 0
    %s176 = sadd.s32 %s175, 1
    %s177 = scalar_select %p174, %s175, %s176
    %p180 = pneg %p174
    %p181 = scmp.eq.s32.totalorder %s13, 1
    %p182 = por %p180, %p181
    %p183 = scmp.ne.s32.totalorder %s175, %s178
    %p184 = scmp.eq.s32.totalorder %s13, 0
    %p185 = por %p183, %p184
    %p186 = scmp.ne.s32.totalorder %s175, %s178
    %p187 = scmp.eq.s32.totalorder %s18, 1
    %p188 = por %p186, %p187
    %p189 = scmp.ne.s32.totalorder %s178, %s179
    %p190 = scmp.eq.s32.totalorder %s18, 0
    %p191 = por %p189, %p190
    %p192 = scmp.ne.s32.totalorder %s178, %s179
    %p193 = scmp.eq.s32.totalorder %s19, 1
    %p194 = por %p192, %p193
    %p196 = scmp.ne.s32.totalorder %s179, %s195
    %p197 = scmp.eq.s32.totalorder %s19, 0
    %p198 = por %p196, %p197
    %p199 = scmp.le.s32.totalorder 1, %s13
    %p200 = scmp.lt.s32.totalorder %s13, 3
    %p201 = pnand %p199, %p200
    %p202 = pneg %p201
    // Predicated region
    $region9: #{dbn_forward.1} parent=5 // pred_check
      _
    $region10: #{dbn_forward.1} parent=5 // pred_check_branch
      %204 = sbr.rel (%p201) target = $region12
    $region11: #{dbn_forward.1} parent=5 // pred_region
      %s205 = ssub.s32 %s13, 1
      // Predicated region
      $region13: #{dbn_forward.1} parent=11 // pred_check
        %p206 = pneg %p60
      $region14: #{dbn_forward.1} parent=11 // pred_check_branch
        %208 = sbr.rel (%p206) target = $region16
      $region15: #{dbn_forward.1} parent=11 // pred_region
        _
      $region16: #{dbn_forward.1} parent=11 // pred_fallthru
        _
      // Predicated region
      $region17: #{dbn_forward.1} parent=11 // pred_check
        %p209 = pneg %p81
      $region18: #{dbn_forward.1} parent=11 // pred_check_branch
        %211 = sbr.rel (%p209) target = $region20
      $region19: #{dbn_forward.1} parent=11 // pred_region
        _
      $region20: #{dbn_forward.1} parent=11 // pred_fallthru
        _
      // Predicated region
      $region21: #{dbn_forward.1} parent=11 // pred_check
        %p212 = pneg %p102
      $region22: #{dbn_forward.1} parent=11 // pred_check_branch
        %214 = sbr.rel (%p212) target = $region24
      $region23: #{dbn_forward.1} parent=11 // pred_region
        _
      $region24: #{dbn_forward.1} parent=11 // pred_fallthru
        _
      // Predicated region
      $region25: #{dbn_forward.1} parent=11 // pred_check
        %p215 = pneg %p123
      $region26: #{dbn_forward.1} parent=11 // pred_check_branch
        %217 = sbr.rel (%p215) target = $region28
      $region27: #{dbn_forward.1} parent=11 // pred_region
        _
      $region28: #{dbn_forward.1} parent=11 // pred_fallthru
        _
      // Predicated region
      $region29: #{dbn_forward.1} parent=11 // pred_check
        %p218 = pneg %p144
      $region30: #{dbn_forward.1} parent=11 // pred_check_branch
        %220 = sbr.rel (%p218) target = $region32
      $region31: #{dbn_forward.1} parent=11 // pred_region
        _
      $region32: #{dbn_forward.1} parent=11 // pred_fallthru
        _
      // Predicated region
      $region33: #{dbn_forward.1} parent=11 // pred_check
        %p221 = pneg %p165
      $region34: #{dbn_forward.1} parent=11 // pred_check_branch
        %223 = sbr.rel (%p221) target = $region36
      $region35: #{dbn_forward.1} parent=11 // pred_region
        _
      $region36: #{dbn_forward.1} parent=11 // pred_fallthru
        _
    $region12: #{dbn_forward.1} parent=5 // pred_fallthru
      _
    %p224 = scmp.lt.s32.totalorder %s13, 2
    // Predicated region
    $region37: #{dbn_forward.1} parent=5 // pred_check
      %p225 = pneg %p224
    $region38: #{dbn_forward.1} parent=5 // pred_check_branch
      %227 = sbr.rel (%p225) target = $region40
    $region39: #{dbn_forward.1} parent=5 // pred_region
      // Predicated region
      $region41: #{dbn_forward.1} parent=39 // pred_check
        %p228 = pneg %p33
      $region42: #{dbn_forward.1} parent=39 // pred_check_branch
        %230 = sbr.rel (%p228) target = $region44
      $region43: #{dbn_forward.1} parent=39 // pred_region
        %s231 = smul.u32 2, %s13
        %p232 = scmp.lt.s32.totalorder %s231, 3
        %s233 = scalar_select %p232, %s231, 3
        %s234 = smul.addr %s233, 7
        %s235 = smul.addr %s234, 4
        %s236 = scalar_lea.vmem %s0, %s235
        %s237 = smul.u32 2, %s13
      $region44: #{dbn_forward.1} parent=39 // pred_fallthru
        _
    $region40: #{dbn_forward.1} parent=5 // pred_fallthru
      _
    %p238 = scmp.le.s32.totalorder 1, %s13
    %p239 = scmp.lt.s32.totalorder %s13, 3
    %p240 = pnand %p238, %p239
    %p241 = pneg %p240
    // Predicated region
    $region45: #{dbn_forward.1} parent=5 // pred_check
      _
    $region46: #{dbn_forward.1} parent=5 // pred_check_branch
      %243 = sbr.rel (%p240) target = $region48
    $region47: #{dbn_forward.1} parent=5 // pred_region
      %s244 = ssub.s32 %s13, 1
      %s245 = smul.u32 2, %s18
      %p246 = scmp.lt.s32.totalorder %s245, 3
      %s247 = scalar_select %p246, %s245, 3
      %s248 = smul.addr %s247, 7
      %s249 = smul.addr %s248, 4
      %s250 = scalar_lea.vmem %s0, %s249
      %p251 = pneg %p39
      %p252 = pneg %p36
      %p253 = pneg %p60
      %p254 = pneg %p57
      %p255 = pneg %p81
      %p256 = pneg %p78
      %p257 = pneg %p102
      %p258 = pneg %p99
      %p259 = pneg %p123
      %p260 = pneg %p120
      %p261 = pneg %p144
      %p262 = pneg %p141
      %p263 = pneg %p165
      %p264 = pneg %p162
      %p265 = pneg %p191
      %p266 = pneg %p188
      %s267 = smul.u32 2, %s18
      %p268 = scmp.lt.s32.totalorder %s267, 3
      %s269 = scalar_select %p268, %s267, 3
      %s270 = smul.addr %s269, 8
      %s271 = scalar_lea.vmem %s7, %s270
      %s272 = smul.u32 2, %s18
      %p273 = scmp.lt.s32.totalorder %s272, 3
      %s274 = scalar_select %p273, %s272, 3
      %s275 = smul.addr %s274, 7
      %s276 = smul.addr %s275, 4
      %s277 = scalar_lea.vmem %s0, %s276
      %s278 = smul.u32 2, %s18
      %s279 = smul.u32 2, %s18
      %p280 = scmp.lt.s32.totalorder %s279, 3
      %s281 = scalar_select %p280, %s279, 3
      %s282 = smul.addr %s281, 8
      %s283 = scalar_lea.vmem %s7, %s282
      %s284 = smul.u32 2, %s18
      %v286 = vld [vmem:[%s277] sm:$0xff]
      %v287 = vld [vmem:[%s277 + $0x8] sm:$0xff]
      %v288 = vld [vmem:[%s277 + $0x10] sm:$0xff]
      %v289 = vld [vmem:[%s277 + $0x18] sm:$0xf]
      %v290 = vld [vmem:[%s277 + $0x1c] sm:$0xff]
      %v291 = vld [vmem:[%s277 + $0x24] sm:$0xff]
      %v292 = vld [vmem:[%s277 + $0x2c] sm:$0xff]
      %v293 = vld [vmem:[%s277 + $0x34] sm:$0xf]
      %v294 = vld [vmem:[%s1] sm:$0xff]
      %v295 = vld [vmem:[%s1 + $0x8] sm:$0xff]
      %v296 = vld [vmem:[%s1 + $0x10] sm:$0xff]
      %v297 = vld [vmem:[%s1 + $0x18] sm:$0xff]
      %v298 = vld [vmem:[%s1 + $0x20] sm:$0xff]
      %v299 = vld [vmem:[%s1 + $0x28] sm:$0xff]
      %v300 = vld [vmem:[%s1 + $0x30] sm:$0xff]
      %v301 = vld [vmem:[%s1 + $0x38] sm:$0xff]
      %v302 = vld [vmem:[%s1 + $0x40] sm:$0xff]
      %v303 = vld [vmem:[%s1 + $0x48] sm:$0xff]
      %v304 = vld [vmem:[%s1 + $0x50] sm:$0xff]
      %v305 = vld [vmem:[%s1 + $0x58] sm:$0xff]
      %v306 = vld [vmem:[%s1 + $0x60] sm:$0xff]
      %v307 = vld [vmem:[%s1 + $0x68] sm:$0xff]
      %v308 = vld [vmem:[%s1 + $0x70] sm:$0xff]
      %v309 = vld [vmem:[%s1 + $0x78] sm:$0xff]
      %v310 = vld [vmem:[%s1 + $0x80] sm:$0xff]
      %v311 = vld [vmem:[%s1 + $0x88] sm:$0xff]
      %v312 = vld [vmem:[%s1 + $0x90] sm:$0xff]
      %v313 = vld [vmem:[%s1 + $0x98] sm:$0xff]
      %v314 = vld [vmem:[%s1 + $0xa0] sm:$0xff]
      %v315 = vld [vmem:[%s1 + $0xa8] sm:$0xff]
      %v316 = vld [vmem:[%s1 + $0xb0] sm:$0xff]
      %v317 = vld [vmem:[%s1 + $0xb8] sm:$0xff]
      %v318 = vld [vmem:[%s1 + $0xc0] sm:$0xff]
      %v319 = vld [vmem:[%s1 + $0xc8] sm:$0xff]
      %v320 = vld [vmem:[%s1 + $0xd0] sm:$0xff]
      %v321 = vld [vmem:[%s1 + $0xd8] sm:$0xff]
      %v322 = vld [vmem:[%s1 + $0xe0] sm:$0xff]
      %v323 = vld [vmem:[%s1 + $0xe8] sm:$0xff]
      %v324 = vld [vmem:[%s1 + $0xf0] sm:$0xff]
      %v325 = vld [vmem:[%s1 + $0xf8] sm:$0xff]
      %v326 = vld [vmem:[%s1 + $0x100] sm:$0xff]
      %v327 = vld [vmem:[%s1 + $0x108] sm:$0xff]
      %v328 = vld [vmem:[%s1 + $0x110] sm:$0xff]
      %v329 = vld [vmem:[%s1 + $0x118] sm:$0xff]
      %v330 = vld [vmem:[%s1 + $0x120] sm:$0xff]
      %v331 = vld [vmem:[%s1 + $0x128] sm:$0xff]
      %v332 = vld [vmem:[%s1 + $0x130] sm:$0xff]
      %v333 = vld [vmem:[%s1 + $0x138] sm:$0xff]
      %v334 = vld [vmem:[%s1 + $0x140] sm:$0xff]
      %v335 = vld [vmem:[%s1 + $0x148] sm:$0xff]
      %v336 = vld [vmem:[%s1 + $0x150] sm:$0xff]
      %v337 = vld [vmem:[%s1 + $0x158] sm:$0xff]
      %v338 = vld [vmem:[%s1 + $0x160] sm:$0xff]
      %v339 = vld [vmem:[%s1 + $0x168] sm:$0xff]
      %v340 = vld [vmem:[%s1 + $0x170] sm:$0xff]
      %v341 = vld [vmem:[%s1 + $0x178] sm:$0xff]
      %v342 = vld [vmem:[%s1 + $0x180] sm:$0xff]
      %v343 = vld [vmem:[%s1 + $0x188] sm:$0xff]
      %v344 = vld [vmem:[%s1 + $0x190] sm:$0xff]
      %v345 = vld [vmem:[%s1 + $0x198] sm:$0xff]
      %v346 = vld [vmem:[%s1 + $0x1a0] sm:$0xff]
      %v347 = vld [vmem:[%s1 + $0x1a8] sm:$0xff]
      %v348 = vld [vmem:[%s1 + $0x1b0] sm:$0xff]
      %v349 = vld [vmem:[%s1 + $0x1b8] sm:$0xff]
      %v350 = vld [vmem:[%s1 + $0x1c0] sm:$0xff]
      %v351 = vld [vmem:[%s1 + $0x1c8] sm:$0xff]
      %v352 = vld [vmem:[%s1 + $0x1d0] sm:$0xff]
      %v353 = vld [vmem:[%s1 + $0x1d8] sm:$0xff]
      %v354 = vld [vmem:[%s1 + $0x1e0] sm:$0xff]
      %v355 = vld [vmem:[%s1 + $0x1e8] sm:$0xff]
      %v356 = vld [vmem:[%s1 + $0x1f0] sm:$0xff]
      %v357 = vld [vmem:[%s1 + $0x1f8] sm:$0xff]
      %v358 = vld [vmem:[%s1 + $0x200] sm:$0xff]
      %v359 = vld [vmem:[%s1 + $0x208] sm:$0xff]
      %v360 = vld [vmem:[%s1 + $0x210] sm:$0xff]
      %v361 = vld [vmem:[%s1 + $0x218] sm:$0xff]
      %v362 = vld [vmem:[%s1 + $0x220] sm:$0xff]
      %v363 = vld [vmem:[%s1 + $0x228] sm:$0xff]
      %v364 = vld [vmem:[%s1 + $0x230] sm:$0xff]
      %v365 = vld [vmem:[%s1 + $0x238] sm:$0xff]
      %v366 = vld [vmem:[%s1 + $0x240] sm:$0xff]
      %v367 = vld [vmem:[%s1 + $0x248] sm:$0xff]
      %v368 = vld [vmem:[%s1 + $0x250] sm:$0xff]
      %v369 = vld [vmem:[%s1 + $0x258] sm:$0xff]
      %v370 = vld [vmem:[%s1 + $0x260] sm:$0xff]
      %v371 = vld [vmem:[%s1 + $0x268] sm:$0xff]
      %v372 = vld [vmem:[%s1 + $0x270] sm:$0xff]
      %v373 = vld [vmem:[%s1 + $0x278] sm:$0xff]
      %v374 = vld [vmem:[%s1 + $0x280] sm:$0xff]
      %v375 = vld [vmem:[%s1 + $0x288] sm:$0xff]
      %v376 = vld [vmem:[%s1 + $0x290] sm:$0xff]
      %v377 = vld [vmem:[%s1 + $0x298] sm:$0xff]
      %v378 = vld [vmem:[%s1 + $0x2a0] sm:$0xff]
      %v379 = vld [vmem:[%s1 + $0x2a8] sm:$0xff]
      %v380 = vld [vmem:[%s1 + $0x2b0] sm:$0xff]
      %v381 = vld [vmem:[%s1 + $0x2b8] sm:$0xff]
      %v382 = vld [vmem:[%s1 + $0x2c0] sm:$0xff]
      %v383 = vld [vmem:[%s1 + $0x2c8] sm:$0xff]
      %v384 = vld [vmem:[%s1 + $0x2d0] sm:$0xff]
      %v385 = vld [vmem:[%s1 + $0x2d8] sm:$0xff]
      %v386 = vld [vmem:[%s1 + $0x2e0] sm:$0xff]
      %v387 = vld [vmem:[%s1 + $0x2e8] sm:$0xff]
      %v388 = vld [vmem:[%s1 + $0x2f0] sm:$0xff]
      %v389 = vld [vmem:[%s1 + $0x2f8] sm:$0xff]
      %v390 = vld [vmem:[%s1 + $0x300] sm:$0xff]
      %v391 = vld [vmem:[%s1 + $0x308] sm:$0xff]
      %v392 = vld [vmem:[%s1 + $0x310] sm:$0xff]
      %v393 = vld [vmem:[%s1 + $0x318] sm:$0xff]
      %v394 = vld [vmem:[%s1 + $0x320] sm:$0xff]
      %v395 = vld [vmem:[%s1 + $0x328] sm:$0xff]
      %v396 = vld [vmem:[%s1 + $0x330] sm:$0xff]
      %v397 = vld [vmem:[%s1 + $0x338] sm:$0xff]
      %v398 = vld [vmem:[%s1 + $0x340] sm:$0xff]
      %v399 = vld [vmem:[%s1 + $0x348] sm:$0xff]
      %v400 = vld [vmem:[%s1 + $0x350] sm:$0xff]
      %v401 = vld [vmem:[%s1 + $0x358] sm:$0xff]
      %v402 = vld [vmem:[%s1 + $0x360] sm:$0xff]
      %v403 = vld [vmem:[%s1 + $0x368] sm:$0xff]
      %v404 = vld [vmem:[%s1 + $0x370] sm:$0xff]
      %v405 = vld [vmem:[%s1 + $0x378] sm:$0xff]
      %v406 = vld [vmem:[%s1 + $0x380] sm:$0xff]
      %v407 = vld [vmem:[%s1 + $0x388] sm:$0xff]
      %v408 = vld [vmem:[%s1 + $0x390] sm:$0xff]
      %v409 = vld [vmem:[%s1 + $0x398] sm:$0xff]
      %v410 = vld [vmem:[%s1 + $0x3a0] sm:$0xff]
      %v411 = vld [vmem:[%s1 + $0x3a8] sm:$0xff]
      %v412 = vld [vmem:[%s1 + $0x3b0] sm:$0xff]
      %v413 = vld [vmem:[%s1 + $0x3b8] sm:$0xff]
      %v414 = vld [vmem:[%s1 + $0x3c0] sm:$0xff]
      %v415 = vld [vmem:[%s1 + $0x3c8] sm:$0xff]
      %v416 = vld [vmem:[%s1 + $0x3d0] sm:$0xff]
      %v417 = vld [vmem:[%s1 + $0x3d8] sm:$0xff]
      %v418 = vld [vmem:[%s1 + $0x3e0] sm:$0xff]
      %v419 = vld [vmem:[%s1 + $0x3e8] sm:$0xff]
      %v420 = vld [vmem:[%s1 + $0x3f0] sm:$0xff]
      %v421 = vld [vmem:[%s1 + $0x3f8] sm:$0xff]
      %v422 = vld [vmem:[%s1 + $0x400] sm:$0xff]
      %v423 = vld [vmem:[%s1 + $0x408] sm:$0xff]
      %v424 = vld [vmem:[%s1 + $0x410] sm:$0xff]
      %v425 = vld [vmem:[%s1 + $0x418] sm:$0xff]
      %v426 = vld [vmem:[%s1 + $0x420] sm:$0xff]
      %v427 = vld [vmem:[%s1 + $0x428] sm:$0xff]
      %v428 = vld [vmem:[%s1 + $0x430] sm:$0xff]
      %v429 = vld [vmem:[%s1 + $0x438] sm:$0xff]
      %v430 = vld [vmem:[%s1 + $0x440] sm:$0xff]
      %v431 = vld [vmem:[%s1 + $0x448] sm:$0xff]
      %v432 = vld [vmem:[%s1 + $0x450] sm:$0xff]
      %v433 = vld [vmem:[%s1 + $0x458] sm:$0xff]
      %v434 = vld [vmem:[%s1 + $0x460] sm:$0xff]
      %v435 = vld [vmem:[%s1 + $0x468] sm:$0xff]
      %v436 = vld [vmem:[%s1 + $0x470] sm:$0xff]
      %v437 = vld [vmem:[%s1 + $0x478] sm:$0xff]
      %v438 = vld [vmem:[%s1 + $0x480] sm:$0xff]
      %v439 = vld [vmem:[%s1 + $0x488] sm:$0xff]
      %v440 = vld [vmem:[%s1 + $0x490] sm:$0xff]
      %v441 = vld [vmem:[%s1 + $0x498] sm:$0xff]
      %v442 = vld [vmem:[%s1 + $0x4a0] sm:$0xff]
      %v443 = vld [vmem:[%s1 + $0x4a8] sm:$0xff]
      %v444 = vld [vmem:[%s1 + $0x4b0] sm:$0xff]
      %v445 = vld [vmem:[%s1 + $0x4b8] sm:$0xff]
      %v446 = vld [vmem:[%s1 + $0x4c0] sm:$0xff]
      %v447 = vld [vmem:[%s1 + $0x4c8] sm:$0xff]
      %v448 = vld [vmem:[%s1 + $0x4d0] sm:$0xff]
      %v449 = vld [vmem:[%s1 + $0x4d8] sm:$0xff]
      %v450 = vld [vmem:[%s1 + $0x4e0] sm:$0xff]
      %v451 = vld [vmem:[%s1 + $0x4e8] sm:$0xff]
      %v452 = vld [vmem:[%s1 + $0x4f0] sm:$0xff]
      %v453 = vld [vmem:[%s1 + $0x4f8] sm:$0xff]
      %v454 = vld [vmem:[%s1 + $0x500] sm:$0xff]
      %v455 = vld [vmem:[%s1 + $0x508] sm:$0xff]
      %v456 = vld [vmem:[%s1 + $0x510] sm:$0xff]
      %v457 = vld [vmem:[%s1 + $0x518] sm:$0xff]
      %v458 = vld [vmem:[%s1 + $0x520] sm:$0xff]
      %v459 = vld [vmem:[%s1 + $0x528] sm:$0xff]
      %v460 = vld [vmem:[%s1 + $0x530] sm:$0xff]
      %v461 = vld [vmem:[%s1 + $0x538] sm:$0xff]
      %v462 = vld [vmem:[%s1 + $0x540] sm:$0xff]
      %v463 = vld [vmem:[%s1 + $0x548] sm:$0xff]
      %v464 = vld [vmem:[%s1 + $0x550] sm:$0xff]
      %v465 = vld [vmem:[%s1 + $0x558] sm:$0xff]
      %v466 = vld [vmem:[%s1 + $0x560] sm:$0xff]
      %v467 = vld [vmem:[%s1 + $0x568] sm:$0xff]
      %v468 = vld [vmem:[%s1 + $0x570] sm:$0xff]
      %v469 = vld [vmem:[%s1 + $0x578] sm:$0xff]
      %v470 = vld [vmem:[%s1 + $0x580] sm:$0xff]
      %v471 = vld [vmem:[%s1 + $0x588] sm:$0xff]
      %v472 = vld [vmem:[%s1 + $0x590] sm:$0xff]
      %v473 = vld [vmem:[%s1 + $0x598] sm:$0xff]
      %v474 = vld [vmem:[%s1 + $0x5a0] sm:$0xff]
      %v475 = vld [vmem:[%s1 + $0x5a8] sm:$0xff]
      %v476 = vld [vmem:[%s1 + $0x5b0] sm:$0xff]
      %v477 = vld [vmem:[%s1 + $0x5b8] sm:$0xff]
      %v478 = vld [vmem:[%s1 + $0x5c0] sm:$0xff]
      %v479 = vld [vmem:[%s1 + $0x5c8] sm:$0xff]
      %v480 = vld [vmem:[%s1 + $0x5d0] sm:$0xff]
      %v481 = vld [vmem:[%s1 + $0x5d8] sm:$0xff]
      %v482 = vld [vmem:[%s1 + $0x5e0] sm:$0xff]
      %v483 = vld [vmem:[%s1 + $0x5e8] sm:$0xff]
      %v484 = vld [vmem:[%s1 + $0x5f0] sm:$0xff]
      %v485 = vld [vmem:[%s1 + $0x5f8] sm:$0xff]
      %v486 = vld [vmem:[%s1 + $0x600] sm:$0xff]
      %v487 = vld [vmem:[%s1 + $0x608] sm:$0xff]
      %v488 = vld [vmem:[%s1 + $0x610] sm:$0xff]
      %v489 = vld [vmem:[%s1 + $0x618] sm:$0xff]
      %v490 = vld [vmem:[%s1 + $0x620] sm:$0xff]
      %v491 = vld [vmem:[%s1 + $0x628] sm:$0xff]
      %v492 = vld [vmem:[%s1 + $0x630] sm:$0xff]
      %v493 = vld [vmem:[%s1 + $0x638] sm:$0xff]
      %v494 = vld [vmem:[%s1 + $0x640] sm:$0xff]
      %v495 = vld [vmem:[%s1 + $0x648] sm:$0xff]
      %v496 = vld [vmem:[%s1 + $0x650] sm:$0xff]
      %v497 = vld [vmem:[%s1 + $0x658] sm:$0xff]
      %v498 = vld [vmem:[%s1 + $0x660] sm:$0xff]
      %v499 = vld [vmem:[%s1 + $0x668] sm:$0xff]
      %v500 = vld [vmem:[%s1 + $0x670] sm:$0xff]
      %v501 = vld [vmem:[%s1 + $0x678] sm:$0xff]
      %v502 = vld [vmem:[%s1 + $0x680] sm:$0xff]
      %v503 = vld [vmem:[%s1 + $0x688] sm:$0xff]
      %v504 = vld [vmem:[%s1 + $0x690] sm:$0xff]
      %v505 = vld [vmem:[%s1 + $0x698] sm:$0xff]
      %v506 = vld [vmem:[%s1 + $0x6a0] sm:$0xff]
      %v507 = vld [vmem:[%s1 + $0x6a8] sm:$0xff]
      %v508 = vld [vmem:[%s1 + $0x6b0] sm:$0xff]
      %v509 = vld [vmem:[%s1 + $0x6b8] sm:$0xff]
      %v510 = vld [vmem:[%s1 + $0x6c0] sm:$0xff]
      %v511 = vld [vmem:[%s1 + $0x6c8] sm:$0xff]
      %v512 = vld [vmem:[%s1 + $0x6d0] sm:$0xff]
      %v513 = vld [vmem:[%s1 + $0x6d8] sm:$0xff]
      %v514 = vld [vmem:[%s1 + $0x6e0] sm:$0xff]
      %v515 = vld [vmem:[%s1 + $0x6e8] sm:$0xff]
      %v516 = vld [vmem:[%s1 + $0x6f0] sm:$0xff]
      %v517 = vld [vmem:[%s1 + $0x6f8] sm:$0xff]
      %v518 = vld [vmem:[%s2] sm:$0xf]
      %v520 = vlaneseq
      %v521 = vshrl.u32 %v520, 7
      %v522 = vsub.s32 0, %v521
      %v523 = vrot.slane %v518, %v522
      %v524 = vlaneseq
      %v525 = vshrl.u32 %v524, 7
      %v526 = vsub.s32 1, %v525
      %v527 = vrot.slane %v518, %v526
      %v528 = vlaneseq
      %v529 = vshrl.u32 %v528, 7
      %v530 = vsub.s32 2, %v529
      %v531 = vrot.slane %v518, %v530
      %v532 = vlaneseq
      %v533 = vshrl.u32 %v532, 7
      %v534 = vsub.s32 3, %v533
      %v535 = vrot.slane %v518, %v534
      %v548 = vunpack.c.l.b16 %v286
      %v549 = vunpack.c.h.b16 %v286
      %v550 = vunpack.c.l.b16 %v287
      %v551 = vunpack.c.h.b16 %v287
      %v552 = vunpack.c.l.b16 %v288
      %v553 = vunpack.c.h.b16 %v288
      %v554 = vunpack.c.l.b16 %v289
      %v555 = vunpack.c.l.b16 %v290
      %v556 = vunpack.c.h.b16 %v290
      %v557 = vunpack.c.l.b16 %v291
      %v558 = vunpack.c.h.b16 %v291
      %v559 = vunpack.c.l.b16 %v292
      %v560 = vunpack.c.h.b16 %v292
      %v561 = vunpack.c.l.b16 %v293
      %v562 = vpack.c.b16 %v555, %v548
      %v563 = vpack.c.b16 %v556, %v549
      %v564 = vpack.c.b16 %v557, %v550
      %v565 = vpack.c.b16 %v558, %v551
      %v566 = vpack.c.b16 %v559, %v552
      %v567 = vpack.c.b16 %v560, %v553
      %v568 = vpack.c.b16 %v561, %v554
      %v800 = vunpack.c.l.b16 %v294
      %v801 = vunpack.c.h.b16 %v294
      %v802 = vunpack.c.l.b16 %v295
      %v803 = vunpack.c.h.b16 %v295
      %v804 = vunpack.c.l.b16 %v296
      %v805 = vunpack.c.h.b16 %v296
      %v806 = vunpack.c.l.b16 %v297
      %v807 = vunpack.c.h.b16 %v297
      %v808 = vunpack.c.l.b16 %v298
      %v809 = vunpack.c.h.b16 %v298
      %v810 = vunpack.c.l.b16 %v299
      %v811 = vunpack.c.h.b16 %v299
      %v812 = vunpack.c.l.b16 %v300
      %v813 = vunpack.c.h.b16 %v300
      %v814 = vunpack.c.l.b16 %v301
      %v815 = vunpack.c.h.b16 %v301
      %v816 = vunpack.c.l.b16 %v302
      %v817 = vunpack.c.h.b16 %v302
      %v818 = vunpack.c.l.b16 %v303
      %v819 = vunpack.c.h.b16 %v303
      %v820 = vunpack.c.l.b16 %v304
      %v821 = vunpack.c.h.b16 %v304
      %v822 = vunpack.c.l.b16 %v305
      %v823 = vunpack.c.h.b16 %v305
      %v824 = vunpack.c.l.b16 %v306
      %v825 = vunpack.c.h.b16 %v306
      %v826 = vunpack.c.l.b16 %v307
      %v827 = vunpack.c.h.b16 %v307
      %v828 = vunpack.c.l.b16 %v308
      %v829 = vunpack.c.h.b16 %v308
      %v830 = vunpack.c.l.b16 %v309
      %v831 = vunpack.c.h.b16 %v309
      %v832 = vunpack.c.l.b16 %v310
      %v833 = vunpack.c.h.b16 %v310
      %v834 = vunpack.c.l.b16 %v311
      %v835 = vunpack.c.h.b16 %v311
      %v836 = vunpack.c.l.b16 %v312
      %v837 = vunpack.c.h.b16 %v312
      %v838 = vunpack.c.l.b16 %v313
      %v839 = vunpack.c.h.b16 %v313
      %v840 = vunpack.c.l.b16 %v314
      %v841 = vunpack.c.h.b16 %v314
      %v842 = vunpack.c.l.b16 %v315
      %v843 = vunpack.c.h.b16 %v315
      %v844 = vunpack.c.l.b16 %v316
      %v845 = vunpack.c.h.b16 %v316
      %v846 = vunpack.c.l.b16 %v317
      %v847 = vunpack.c.h.b16 %v317
      %v848 = vunpack.c.l.b16 %v318
      %v849 = vunpack.c.h.b16 %v318
      %v850 = vunpack.c.l.b16 %v319
      %v851 = vunpack.c.h.b16 %v319
      %v852 = vunpack.c.l.b16 %v320
      %v853 = vunpack.c.h.b16 %v320
      %v854 = vunpack.c.l.b16 %v321
      %v855 = vunpack.c.h.b16 %v321
      %v856 = vunpack.c.l.b16 %v322
      %v857 = vunpack.c.h.b16 %v322
      %v858 = vunpack.c.l.b16 %v323
      %v859 = vunpack.c.h.b16 %v323
      %v860 = vunpack.c.l.b16 %v324
      %v861 = vunpack.c.h.b16 %v324
      %v862 = vunpack.c.l.b16 %v325
      %v863 = vunpack.c.h.b16 %v325
      %v864 = vunpack.c.l.b16 %v326
      %v865 = vunpack.c.h.b16 %v326
      %v866 = vunpack.c.l.b16 %v327
      %v867 = vunpack.c.h.b16 %v327
      %v868 = vunpack.c.l.b16 %v328
      %v869 = vunpack.c.h.b16 %v328
      %v870 = vunpack.c.l.b16 %v329
      %v871 = vunpack.c.h.b16 %v329
      %v872 = vunpack.c.l.b16 %v330
      %v873 = vunpack.c.h.b16 %v330
      %v874 = vunpack.c.l.b16 %v331
      %v875 = vunpack.c.h.b16 %v331
      %v876 = vunpack.c.l.b16 %v332
      %v877 = vunpack.c.h.b16 %v332
      %v878 = vunpack.c.l.b16 %v333
      %v879 = vunpack.c.h.b16 %v333
      %v880 = vunpack.c.l.b16 %v334
      %v881 = vunpack.c.h.b16 %v334
      %v882 = vunpack.c.l.b16 %v335
      %v883 = vunpack.c.h.b16 %v335
      %v884 = vunpack.c.l.b16 %v336
      %v885 = vunpack.c.h.b16 %v336
      %v886 = vunpack.c.l.b16 %v337
      %v887 = vunpack.c.h.b16 %v337
      %v888 = vunpack.c.l.b16 %v338
      %v889 = vunpack.c.h.b16 %v338
      %v890 = vunpack.c.l.b16 %v339
      %v891 = vunpack.c.h.b16 %v339
      %v892 = vunpack.c.l.b16 %v340
      %v893 = vunpack.c.h.b16 %v340
      %v894 = vunpack.c.l.b16 %v341
      %v895 = vunpack.c.h.b16 %v341
      %v896 = vunpack.c.l.b16 %v342
      %v897 = vunpack.c.h.b16 %v342
      %v898 = vunpack.c.l.b16 %v343
      %v899 = vunpack.c.h.b16 %v343
      %v900 = vunpack.c.l.b16 %v344
      %v901 = vunpack.c.h.b16 %v344
      %v902 = vunpack.c.l.b16 %v345
      %v903 = vunpack.c.h.b16 %v345
      %v904 = vunpack.c.l.b16 %v346
      %v905 = vunpack.c.h.b16 %v346
      %v906 = vunpack.c.l.b16 %v347
      %v907 = vunpack.c.h.b16 %v347
      %v908 = vunpack.c.l.b16 %v348
      %v909 = vunpack.c.h.b16 %v348
      %v910 = vunpack.c.l.b16 %v349
      %v911 = vunpack.c.h.b16 %v349
      %v912 = vunpack.c.l.b16 %v350
      %v913 = vunpack.c.h.b16 %v350
      %v914 = vunpack.c.l.b16 %v351
      %v915 = vunpack.c.h.b16 %v351
      %v916 = vunpack.c.l.b16 %v352
      %v917 = vunpack.c.h.b16 %v352
      %v918 = vunpack.c.l.b16 %v353
      %v919 = vunpack.c.h.b16 %v353
      %v920 = vunpack.c.l.b16 %v354
      %v921 = vunpack.c.h.b16 %v354
      %v922 = vunpack.c.l.b16 %v355
      %v923 = vunpack.c.h.b16 %v355
      %v924 = vunpack.c.l.b16 %v356
      %v925 = vunpack.c.h.b16 %v356
      %v926 = vunpack.c.l.b16 %v357
      %v927 = vunpack.c.h.b16 %v357
      %v928 = vunpack.c.l.b16 %v358
      %v929 = vunpack.c.h.b16 %v358
      %v930 = vunpack.c.l.b16 %v359
      %v931 = vunpack.c.h.b16 %v359
      %v932 = vunpack.c.l.b16 %v360
      %v933 = vunpack.c.h.b16 %v360
      %v934 = vunpack.c.l.b16 %v361
      %v935 = vunpack.c.h.b16 %v361
      %v936 = vunpack.c.l.b16 %v362
      %v937 = vunpack.c.h.b16 %v362
      %v938 = vunpack.c.l.b16 %v363
      %v939 = vunpack.c.h.b16 %v363
      %v940 = vunpack.c.l.b16 %v364
      %v941 = vunpack.c.h.b16 %v364
      %v942 = vunpack.c.l.b16 %v365
      %v943 = vunpack.c.h.b16 %v365
      %v944 = vunpack.c.l.b16 %v366
      %v945 = vunpack.c.h.b16 %v366
      %v946 = vunpack.c.l.b16 %v367
      %v947 = vunpack.c.h.b16 %v367
      %v948 = vunpack.c.l.b16 %v368
      %v949 = vunpack.c.h.b16 %v368
      %v950 = vunpack.c.l.b16 %v369
      %v951 = vunpack.c.h.b16 %v369
      %v952 = vunpack.c.l.b16 %v370
      %v953 = vunpack.c.h.b16 %v370
      %v954 = vunpack.c.l.b16 %v371
      %v955 = vunpack.c.h.b16 %v371
      %v956 = vunpack.c.l.b16 %v372
      %v957 = vunpack.c.h.b16 %v372
      %v958 = vunpack.c.l.b16 %v373
      %v959 = vunpack.c.h.b16 %v373
      %v960 = vunpack.c.l.b16 %v374
      %v961 = vunpack.c.h.b16 %v374
      %v962 = vunpack.c.l.b16 %v375
      %v963 = vunpack.c.h.b16 %v375
      %v964 = vunpack.c.l.b16 %v376
      %v965 = vunpack.c.h.b16 %v376
      %v966 = vunpack.c.l.b16 %v377
      %v967 = vunpack.c.h.b16 %v377
      %v968 = vunpack.c.l.b16 %v378
      %v969 = vunpack.c.h.b16 %v378
      %v970 = vunpack.c.l.b16 %v379
      %v971 = vunpack.c.h.b16 %v379
      %v972 = vunpack.c.l.b16 %v380
      %v973 = vunpack.c.h.b16 %v380
      %v974 = vunpack.c.l.b16 %v381
      %v975 = vunpack.c.h.b16 %v381
      %v976 = vunpack.c.l.b16 %v382
      %v977 = vunpack.c.h.b16 %v382
      %v978 = vunpack.c.l.b16 %v383
      %v979 = vunpack.c.h.b16 %v383
      %v980 = vunpack.c.l.b16 %v384
      %v981 = vunpack.c.h.b16 %v384
      %v982 = vunpack.c.l.b16 %v385
      %v983 = vunpack.c.h.b16 %v385
      %v984 = vunpack.c.l.b16 %v386
      %v985 = vunpack.c.h.b16 %v386
      %v986 = vunpack.c.l.b16 %v387
      %v987 = vunpack.c.h.b16 %v387
      %v988 = vunpack.c.l.b16 %v388
      %v989 = vunpack.c.h.b16 %v388
      %v990 = vunpack.c.l.b16 %v389
      %v991 = vunpack.c.h.b16 %v389
      %v992 = vunpack.c.l.b16 %v390
      %v993 = vunpack.c.h.b16 %v390
      %v994 = vunpack.c.l.b16 %v391
      %v995 = vunpack.c.h.b16 %v391
      %v996 = vunpack.c.l.b16 %v392
      %v997 = vunpack.c.h.b16 %v392
      %v998 = vunpack.c.l.b16 %v393
      %v999 = vunpack.c.h.b16 %v393
      %v1000 = vunpack.c.l.b16 %v394
      %v1001 = vunpack.c.h.b16 %v394
      %v1002 = vunpack.c.l.b16 %v395
      %v1003 = vunpack.c.h.b16 %v395
      %v1004 = vunpack.c.l.b16 %v396
      %v1005 = vunpack.c.h.b16 %v396
      %v1006 = vunpack.c.l.b16 %v397
      %v1007 = vunpack.c.h.b16 %v397
      %v1008 = vunpack.c.l.b16 %v398
      %v1009 = vunpack.c.h.b16 %v398
      %v1010 = vunpack.c.l.b16 %v399
      %v1011 = vunpack.c.h.b16 %v399
      %v1012 = vunpack.c.l.b16 %v400
      %v1013 = vunpack.c.h.b16 %v400
      %v1014 = vunpack.c.l.b16 %v401
      %v1015 = vunpack.c.h.b16 %v401
      %v1016 = vunpack.c.l.b16 %v402
      %v1017 = vunpack.c.h.b16 %v402
      %v1018 = vunpack.c.l.b16 %v403
      %v1019 = vunpack.c.h.b16 %v403
      %v1020 = vunpack.c.l.b16 %v404
      %v1021 = vunpack.c.h.b16 %v404
      %v1022 = vunpack.c.l.b16 %v405
      %v1023 = vunpack.c.h.b16 %v405
      %v1024 = vunpack.c.l.b16 %v406
      %v1025 = vunpack.c.h.b16 %v406
      %v1026 = vunpack.c.l.b16 %v407
      %v1027 = vunpack.c.h.b16 %v407
      %v1028 = vunpack.c.l.b16 %v408
      %v1029 = vunpack.c.h.b16 %v408
      %v1030 = vunpack.c.l.b16 %v409
      %v1031 = vunpack.c.h.b16 %v409
      %v1032 = vunpack.c.l.b16 %v410
      %v1033 = vunpack.c.h.b16 %v410
      %v1034 = vunpack.c.l.b16 %v411
      %v1035 = vunpack.c.h.b16 %v411
      %v1036 = vunpack.c.l.b16 %v412
      %v1037 = vunpack.c.h.b16 %v412
      %v1038 = vunpack.c.l.b16 %v413
      %v1039 = vunpack.c.h.b16 %v413
      %v1040 = vunpack.c.l.b16 %v414
      %v1041 = vunpack.c.h.b16 %v414
      %v1042 = vunpack.c.l.b16 %v415
      %v1043 = vunpack.c.h.b16 %v415
      %v1044 = vunpack.c.l.b16 %v416
      %v1045 = vunpack.c.h.b16 %v416
      %v1046 = vunpack.c.l.b16 %v417
      %v1047 = vunpack.c.h.b16 %v417
      %v1048 = vunpack.c.l.b16 %v418
      %v1049 = vunpack.c.h.b16 %v418
      %v1050 = vunpack.c.l.b16 %v419
      %v1051 = vunpack.c.h.b16 %v419
      %v1052 = vunpack.c.l.b16 %v420
      %v1053 = vunpack.c.h.b16 %v420
      %v1054 = vunpack.c.l.b16 %v421
      %v1055 = vunpack.c.h.b16 %v421
      %v1056 = vunpack.c.l.b16 %v422
      %v1057 = vunpack.c.h.b16 %v422
      %v1058 = vunpack.c.l.b16 %v423
      %v1059 = vunpack.c.h.b16 %v423
      %v1060 = vunpack.c.l.b16 %v424
      %v1061 = vunpack.c.h.b16 %v424
      %v1062 = vunpack.c.l.b16 %v425
      %v1063 = vunpack.c.h.b16 %v425
      %v1064 = vunpack.c.l.b16 %v426
      %v1065 = vunpack.c.h.b16 %v426
      %v1066 = vunpack.c.l.b16 %v427
      %v1067 = vunpack.c.h.b16 %v427
      %v1068 = vunpack.c.l.b16 %v428
      %v1069 = vunpack.c.h.b16 %v428
      %v1070 = vunpack.c.l.b16 %v429
      %v1071 = vunpack.c.h.b16 %v429
      %v1072 = vunpack.c.l.b16 %v430
      %v1073 = vunpack.c.h.b16 %v430
      %v1074 = vunpack.c.l.b16 %v431
      %v1075 = vunpack.c.h.b16 %v431
      %v1076 = vunpack.c.l.b16 %v432
      %v1077 = vunpack.c.h.b16 %v432
      %v1078 = vunpack.c.l.b16 %v433
      %v1079 = vunpack.c.h.b16 %v433
      %v1080 = vunpack.c.l.b16 %v434
      %v1081 = vunpack.c.h.b16 %v434
      %v1082 = vunpack.c.l.b16 %v435
      %v1083 = vunpack.c.h.b16 %v435
      %v1084 = vunpack.c.l.b16 %v436
      %v1085 = vunpack.c.h.b16 %v436
      %v1086 = vunpack.c.l.b16 %v437
      %v1087 = vunpack.c.h.b16 %v437
      %v1088 = vunpack.c.l.b16 %v438
      %v1089 = vunpack.c.h.b16 %v438
      %v1090 = vunpack.c.l.b16 %v439
      %v1091 = vunpack.c.h.b16 %v439
      %v1092 = vunpack.c.l.b16 %v440
      %v1093 = vunpack.c.h.b16 %v440
      %v1094 = vunpack.c.l.b16 %v441
      %v1095 = vunpack.c.h.b16 %v441
      %v1096 = vunpack.c.l.b16 %v442
      %v1097 = vunpack.c.h.b16 %v442
      %v1098 = vunpack.c.l.b16 %v443
      %v1099 = vunpack.c.h.b16 %v443
      %v1100 = vunpack.c.l.b16 %v444
      %v1101 = vunpack.c.h.b16 %v444
      %v1102 = vunpack.c.l.b16 %v445
      %v1103 = vunpack.c.h.b16 %v445
      %v1104 = vunpack.c.l.b16 %v446
      %v1105 = vunpack.c.h.b16 %v446
      %v1106 = vunpack.c.l.b16 %v447
      %v1107 = vunpack.c.h.b16 %v447
      %v1108 = vunpack.c.l.b16 %v448
      %v1109 = vunpack.c.h.b16 %v448
      %v1110 = vunpack.c.l.b16 %v449
      %v1111 = vunpack.c.h.b16 %v449
      %v1112 = vunpack.c.l.b16 %v450
      %v1113 = vunpack.c.h.b16 %v450
      %v1114 = vunpack.c.l.b16 %v451
      %v1115 = vunpack.c.h.b16 %v451
      %v1116 = vunpack.c.l.b16 %v452
      %v1117 = vunpack.c.h.b16 %v452
      %v1118 = vunpack.c.l.b16 %v453
      %v1119 = vunpack.c.h.b16 %v453
      %v1120 = vunpack.c.l.b16 %v454
      %v1121 = vunpack.c.h.b16 %v454
      %v1122 = vunpack.c.l.b16 %v455
      %v1123 = vunpack.c.h.b16 %v455
      %v1124 = vunpack.c.l.b16 %v456
      %v1125 = vunpack.c.h.b16 %v456
      %v1126 = vunpack.c.l.b16 %v457
      %v1127 = vunpack.c.h.b16 %v457
      %v1128 = vunpack.c.l.b16 %v458
      %v1129 = vunpack.c.h.b16 %v458
      %v1130 = vunpack.c.l.b16 %v459
      %v1131 = vunpack.c.h.b16 %v459
      %v1132 = vunpack.c.l.b16 %v460
      %v1133 = vunpack.c.h.b16 %v460
      %v1134 = vunpack.c.l.b16 %v461
      %v1135 = vunpack.c.h.b16 %v461
      %v1136 = vunpack.c.l.b16 %v462
      %v1137 = vunpack.c.h.b16 %v462
      %v1138 = vunpack.c.l.b16 %v463
      %v1139 = vunpack.c.h.b16 %v463
      %v1140 = vunpack.c.l.b16 %v464
      %v1141 = vunpack.c.h.b16 %v464
      %v1142 = vunpack.c.l.b16 %v465
      %v1143 = vunpack.c.h.b16 %v465
      %v1144 = vunpack.c.l.b16 %v466
      %v1145 = vunpack.c.h.b16 %v466
      %v1146 = vunpack.c.l.b16 %v467
      %v1147 = vunpack.c.h.b16 %v467
      %v1148 = vunpack.c.l.b16 %v468
      %v1149 = vunpack.c.h.b16 %v468
      %v1150 = vunpack.c.l.b16 %v469
      %v1151 = vunpack.c.h.b16 %v469
      %v1152 = vunpack.c.l.b16 %v470
      %v1153 = vunpack.c.h.b16 %v470
      %v1154 = vunpack.c.l.b16 %v471
      %v1155 = vunpack.c.h.b16 %v471
      %v1156 = vunpack.c.l.b16 %v472
      %v1157 = vunpack.c.h.b16 %v472
      %v1158 = vunpack.c.l.b16 %v473
      %v1159 = vunpack.c.h.b16 %v473
      %v1160 = vunpack.c.l.b16 %v474
      %v1161 = vunpack.c.h.b16 %v474
      %v1162 = vunpack.c.l.b16 %v475
      %v1163 = vunpack.c.h.b16 %v475
      %v1164 = vunpack.c.l.b16 %v476
      %v1165 = vunpack.c.h.b16 %v476
      %v1166 = vunpack.c.l.b16 %v477
      %v1167 = vunpack.c.h.b16 %v477
      %v1168 = vunpack.c.l.b16 %v478
      %v1169 = vunpack.c.h.b16 %v478
      %v1170 = vunpack.c.l.b16 %v479
      %v1171 = vunpack.c.h.b16 %v479
      %v1172 = vunpack.c.l.b16 %v480
      %v1173 = vunpack.c.h.b16 %v480
      %v1174 = vunpack.c.l.b16 %v481
      %v1175 = vunpack.c.h.b16 %v481
      %v1176 = vunpack.c.l.b16 %v482
      %v1177 = vunpack.c.h.b16 %v482
      %v1178 = vunpack.c.l.b16 %v483
      %v1179 = vunpack.c.h.b16 %v483
      %v1180 = vunpack.c.l.b16 %v484
      %v1181 = vunpack.c.h.b16 %v484
      %v1182 = vunpack.c.l.b16 %v485
      %v1183 = vunpack.c.h.b16 %v485
      %v1184 = vunpack.c.l.b16 %v486
      %v1185 = vunpack.c.h.b16 %v486
      %v1186 = vunpack.c.l.b16 %v487
      %v1187 = vunpack.c.h.b16 %v487
      %v1188 = vunpack.c.l.b16 %v488
      %v1189 = vunpack.c.h.b16 %v488
      %v1190 = vunpack.c.l.b16 %v489
      %v1191 = vunpack.c.h.b16 %v489
      %v1192 = vunpack.c.l.b16 %v490
      %v1193 = vunpack.c.h.b16 %v490
      %v1194 = vunpack.c.l.b16 %v491
      %v1195 = vunpack.c.h.b16 %v491
      %v1196 = vunpack.c.l.b16 %v492
      %v1197 = vunpack.c.h.b16 %v492
      %v1198 = vunpack.c.l.b16 %v493
      %v1199 = vunpack.c.h.b16 %v493
      %v1200 = vunpack.c.l.b16 %v494
      %v1201 = vunpack.c.h.b16 %v494
      %v1202 = vunpack.c.l.b16 %v495
      %v1203 = vunpack.c.h.b16 %v495
      %v1204 = vunpack.c.l.b16 %v496
      %v1205 = vunpack.c.h.b16 %v496
      %v1206 = vunpack.c.l.b16 %v497
      %v1207 = vunpack.c.h.b16 %v497
      %v1208 = vunpack.c.l.b16 %v498
      %v1209 = vunpack.c.h.b16 %v498
      %v1210 = vunpack.c.l.b16 %v499
      %v1211 = vunpack.c.h.b16 %v499
      %v1212 = vunpack.c.l.b16 %v500
      %v1213 = vunpack.c.h.b16 %v500
      %v1214 = vunpack.c.l.b16 %v501
      %v1215 = vunpack.c.h.b16 %v501
      %v1216 = vunpack.c.l.b16 %v502
      %v1217 = vunpack.c.h.b16 %v502
      %v1218 = vunpack.c.l.b16 %v503
      %v1219 = vunpack.c.h.b16 %v503
      %v1220 = vunpack.c.l.b16 %v504
      %v1221 = vunpack.c.h.b16 %v504
      %v1222 = vunpack.c.l.b16 %v505
      %v1223 = vunpack.c.h.b16 %v505
      %v1224 = vunpack.c.l.b16 %v506
      %v1225 = vunpack.c.h.b16 %v506
      %v1226 = vunpack.c.l.b16 %v507
      %v1227 = vunpack.c.h.b16 %v507
      %v1228 = vunpack.c.l.b16 %v508
      %v1229 = vunpack.c.h.b16 %v508
      %v1230 = vunpack.c.l.b16 %v509
      %v1231 = vunpack.c.h.b16 %v509
      %v1232 = vunpack.c.l.b16 %v510
      %v1233 = vunpack.c.h.b16 %v510
      %v1234 = vunpack.c.l.b16 %v511
      %v1235 = vunpack.c.h.b16 %v511
      %v1236 = vunpack.c.l.b16 %v512
      %v1237 = vunpack.c.h.b16 %v512
      %v1238 = vunpack.c.l.b16 %v513
      %v1239 = vunpack.c.h.b16 %v513
      %v1240 = vunpack.c.l.b16 %v514
      %v1241 = vunpack.c.h.b16 %v514
      %v1242 = vunpack.c.l.b16 %v515
      %v1243 = vunpack.c.h.b16 %v515
      %v1244 = vunpack.c.l.b16 %v516
      %v1245 = vunpack.c.h.b16 %v516
      %v1246 = vunpack.c.l.b16 %v517
      %v1247 = vunpack.c.h.b16 %v517
      %v1248 = vpack.c.b16 %v804, %v800
      %v1249 = vpack.c.b16 %v805, %v801
      %v1250 = vpack.c.b16 %v806, %v802
      %v1251 = vpack.c.b16 %v807, %v803
      %v1252 = vpack.c.b16 %v812, %v808
      %v1253 = vpack.c.b16 %v813, %v809
      %v1254 = vpack.c.b16 %v814, %v810
      %v1255 = vpack.c.b16 %v815, %v811
      %v1256 = vpack.c.b16 %v820, %v816
      %v1257 = vpack.c.b16 %v821, %v817
      %v1258 = vpack.c.b16 %v822, %v818
      %v1259 = vpack.c.b16 %v823, %v819
      %v1260 = vpack.c.b16 %v828, %v824
      %v1261 = vpack.c.b16 %v829, %v825
      %v1262 = vpack.c.b16 %v830, %v826
      %v1263 = vpack.c.b16 %v831, %v827
      %v1264 = vpack.c.b16 %v836, %v832
      %v1265 = vpack.c.b16 %v837, %v833
      %v1266 = vpack.c.b16 %v838, %v834
      %v1267 = vpack.c.b16 %v839, %v835
      %v1268 = vpack.c.b16 %v844, %v840
      %v1269 = vpack.c.b16 %v845, %v841
      %v1270 = vpack.c.b16 %v846, %v842
      %v1271 = vpack.c.b16 %v847, %v843
      %v1272 = vpack.c.b16 %v852, %v848
      %v1273 = vpack.c.b16 %v853, %v849
      %v1274 = vpack.c.b16 %v854, %v850
      %v1275 = vpack.c.b16 %v855, %v851
      %v1276 = vpack.c.b16 %v860, %v856
      %v1277 = vpack.c.b16 %v861, %v857
      %v1278 = vpack.c.b16 %v862, %v858
      %v1279 = vpack.c.b16 %v863, %v859
      %v1280 = vpack.c.b16 %v868, %v864
      %v1281 = vpack.c.b16 %v869, %v865
      %v1282 = vpack.c.b16 %v870, %v866
      %v1283 = vpack.c.b16 %v871, %v867
      %v1284 = vpack.c.b16 %v876, %v872
      %v1285 = vpack.c.b16 %v877, %v873
      %v1286 = vpack.c.b16 %v878, %v874
      %v1287 = vpack.c.b16 %v879, %v875
      %v1288 = vpack.c.b16 %v884, %v880
      %v1289 = vpack.c.b16 %v885, %v881
      %v1290 = vpack.c.b16 %v886, %v882
      %v1291 = vpack.c.b16 %v887, %v883
      %v1292 = vpack.c.b16 %v892, %v888
      %v1293 = vpack.c.b16 %v893, %v889
      %v1294 = vpack.c.b16 %v894, %v890
      %v1295 = vpack.c.b16 %v895, %v891
      %v1296 = vpack.c.b16 %v900, %v896
      %v1297 = vpack.c.b16 %v901, %v897
      %v1298 = vpack.c.b16 %v902, %v898
      %v1299 = vpack.c.b16 %v903, %v899
      %v1300 = vpack.c.b16 %v908, %v904
      %v1301 = vpack.c.b16 %v909, %v905
      %v1302 = vpack.c.b16 %v910, %v906
      %v1303 = vpack.c.b16 %v911, %v907
      %v1304 = vpack.c.b16 %v916, %v912
      %v1305 = vpack.c.b16 %v917, %v913
      %v1306 = vpack.c.b16 %v918, %v914
      %v1307 = vpack.c.b16 %v919, %v915
      %v1308 = vpack.c.b16 %v924, %v920
      %v1309 = vpack.c.b16 %v925, %v921
      %v1310 = vpack.c.b16 %v926, %v922
      %v1311 = vpack.c.b16 %v927, %v923
      %v1312 = vpack.c.b16 %v932, %v928
      %v1313 = vpack.c.b16 %v933, %v929
      %v1314 = vpack.c.b16 %v934, %v930
      %v1315 = vpack.c.b16 %v935, %v931
      %v1316 = vpack.c.b16 %v940, %v936
      %v1317 = vpack.c.b16 %v941, %v937
      %v1318 = vpack.c.b16 %v942, %v938
      %v1319 = vpack.c.b16 %v943, %v939
      %v1320 = vpack.c.b16 %v948, %v944
      %v1321 = vpack.c.b16 %v949, %v945
      %v1322 = vpack.c.b16 %v950, %v946
      %v1323 = vpack.c.b16 %v951, %v947
      %v1324 = vpack.c.b16 %v956, %v952
      %v1325 = vpack.c.b16 %v957, %v953
      %v1326 = vpack.c.b16 %v958, %v954
      %v1327 = vpack.c.b16 %v959, %v955
      %v1328 = vpack.c.b16 %v964, %v960
      %v1329 = vpack.c.b16 %v965, %v961
      %v1330 = vpack.c.b16 %v966, %v962
      %v1331 = vpack.c.b16 %v967, %v963
      %v1332 = vpack.c.b16 %v972, %v968
      %v1333 = vpack.c.b16 %v973, %v969
      %v1334 = vpack.c.b16 %v974, %v970
      %v1335 = vpack.c.b16 %v975, %v971
      %v1336 = vpack.c.b16 %v980, %v976
      %v1337 = vpack.c.b16 %v981, %v977
      %v1338 = vpack.c.b16 %v982, %v978
      %v1339 = vpack.c.b16 %v983, %v979
      %v1340 = vpack.c.b16 %v988, %v984
      %v1341 = vpack.c.b16 %v989, %v985
      %v1342 = vpack.c.b16 %v990, %v986
      %v1343 = vpack.c.b16 %v991, %v987
      %v1344 = vpack.c.b16 %v996, %v992
      %v1345 = vpack.c.b16 %v997, %v993
      %v1346 = vpack.c.b16 %v998, %v994
      %v1347 = vpack.c.b16 %v999, %v995
      %v1348 = vpack.c.b16 %v1004, %v1000
      %v1349 = vpack.c.b16 %v1005, %v1001
      %v1350 = vpack.c.b16 %v1006, %v1002
      %v1351 = vpack.c.b16 %v1007, %v1003
      %v1352 = vpack.c.b16 %v1012, %v1008
      %v1353 = vpack.c.b16 %v1013, %v1009
      %v1354 = vpack.c.b16 %v1014, %v1010
      %v1355 = vpack.c.b16 %v1015, %v1011
      %v1356 = vpack.c.b16 %v1020, %v1016
      %v1357 = vpack.c.b16 %v1021, %v1017
      %v1358 = vpack.c.b16 %v1022, %v1018
      %v1359 = vpack.c.b16 %v1023, %v1019
      %v1360 = vpack.c.b16 %v1028, %v1024
      %v1361 = vpack.c.b16 %v1029, %v1025
      %v1362 = vpack.c.b16 %v1030, %v1026
      %v1363 = vpack.c.b16 %v1031, %v1027
      %v1364 = vpack.c.b16 %v1036, %v1032
      %v1365 = vpack.c.b16 %v1037, %v1033
      %v1366 = vpack.c.b16 %v1038, %v1034
      %v1367 = vpack.c.b16 %v1039, %v1035
      %v1368 = vpack.c.b16 %v1044, %v1040
      %v1369 = vpack.c.b16 %v1045, %v1041
      %v1370 = vpack.c.b16 %v1046, %v1042
      %v1371 = vpack.c.b16 %v1047, %v1043
      %v1372 = vpack.c.b16 %v1052, %v1048
      %v1373 = vpack.c.b16 %v1053, %v1049
      %v1374 = vpack.c.b16 %v1054, %v1050
      %v1375 = vpack.c.b16 %v1055, %v1051
      %v1376 = vpack.c.b16 %v1060, %v1056
      %v1377 = vpack.c.b16 %v1061, %v1057
      %v1378 = vpack.c.b16 %v1062, %v1058
      %v1379 = vpack.c.b16 %v1063, %v1059
      %v1380 = vpack.c.b16 %v1068, %v1064
      %v1381 = vpack.c.b16 %v1069, %v1065
      %v1382 = vpack.c.b16 %v1070, %v1066
      %v1383 = vpack.c.b16 %v1071, %v1067
      %v1384 = vpack.c.b16 %v1076, %v1072
      %v1385 = vpack.c.b16 %v1077, %v1073
      %v1386 = vpack.c.b16 %v1078, %v1074
      %v1387 = vpack.c.b16 %v1079, %v1075
      %v1388 = vpack.c.b16 %v1084, %v1080
      %v1389 = vpack.c.b16 %v1085, %v1081
      %v1390 = vpack.c.b16 %v1086, %v1082
      %v1391 = vpack.c.b16 %v1087, %v1083
      %v1392 = vpack.c.b16 %v1092, %v1088
      %v1393 = vpack.c.b16 %v1093, %v1089
      %v1394 = vpack.c.b16 %v1094, %v1090
      %v1395 = vpack.c.b16 %v1095, %v1091
      %v1396 = vpack.c.b16 %v1100, %v1096
      %v1397 = vpack.c.b16 %v1101, %v1097
      %v1398 = vpack.c.b16 %v1102, %v1098
      %v1399 = vpack.c.b16 %v1103, %v1099
      %v1400 = vpack.c.b16 %v1108, %v1104
      %v1401 = vpack.c.b16 %v1109, %v1105
      %v1402 = vpack.c.b16 %v1110, %v1106
      %v1403 = vpack.c.b16 %v1111, %v1107
      %v1404 = vpack.c.b16 %v1116, %v1112
      %v1405 = vpack.c.b16 %v1117, %v1113
      %v1406 = vpack.c.b16 %v1118, %v1114
      %v1407 = vpack.c.b16 %v1119, %v1115
      %v1408 = vpack.c.b16 %v1124, %v1120
      %v1409 = vpack.c.b16 %v1125, %v1121
      %v1410 = vpack.c.b16 %v1126, %v1122
      %v1411 = vpack.c.b16 %v1127, %v1123
      %v1412 = vpack.c.b16 %v1132, %v1128
      %v1413 = vpack.c.b16 %v1133, %v1129
      %v1414 = vpack.c.b16 %v1134, %v1130
      %v1415 = vpack.c.b16 %v1135, %v1131
      %v1416 = vpack.c.b16 %v1140, %v1136
      %v1417 = vpack.c.b16 %v1141, %v1137
      %v1418 = vpack.c.b16 %v1142, %v1138
      %v1419 = vpack.c.b16 %v1143, %v1139
      %v1420 = vpack.c.b16 %v1148, %v1144
      %v1421 = vpack.c.b16 %v1149, %v1145
      %v1422 = vpack.c.b16 %v1150, %v1146
      %v1423 = vpack.c.b16 %v1151, %v1147
      %v1424 = vpack.c.b16 %v1156, %v1152
      %v1425 = vpack.c.b16 %v1157, %v1153
      %v1426 = vpack.c.b16 %v1158, %v1154
      %v1427 = vpack.c.b16 %v1159, %v1155
      %v1428 = vpack.c.b16 %v1164, %v1160
      %v1429 = vpack.c.b16 %v1165, %v1161
      %v1430 = vpack.c.b16 %v1166, %v1162
      %v1431 = vpack.c.b16 %v1167, %v1163
      %v1432 = vpack.c.b16 %v1172, %v1168
      %v1433 = vpack.c.b16 %v1173, %v1169
      %v1434 = vpack.c.b16 %v1174, %v1170
      %v1435 = vpack.c.b16 %v1175, %v1171
      %v1436 = vpack.c.b16 %v1180, %v1176
      %v1437 = vpack.c.b16 %v1181, %v1177
      %v1438 = vpack.c.b16 %v1182, %v1178
      %v1439 = vpack.c.b16 %v1183, %v1179
      %v1440 = vpack.c.b16 %v1188, %v1184
      %v1441 = vpack.c.b16 %v1189, %v1185
      %v1442 = vpack.c.b16 %v1190, %v1186
      %v1443 = vpack.c.b16 %v1191, %v1187
      %v1444 = vpack.c.b16 %v1196, %v1192
      %v1445 = vpack.c.b16 %v1197, %v1193
      %v1446 = vpack.c.b16 %v1198, %v1194
      %v1447 = vpack.c.b16 %v1199, %v1195
      %v1448 = vpack.c.b16 %v1204, %v1200
      %v1449 = vpack.c.b16 %v1205, %v1201
      %v1450 = vpack.c.b16 %v1206, %v1202
      %v1451 = vpack.c.b16 %v1207, %v1203
      %v1452 = vpack.c.b16 %v1212, %v1208
      %v1453 = vpack.c.b16 %v1213, %v1209
      %v1454 = vpack.c.b16 %v1214, %v1210
      %v1455 = vpack.c.b16 %v1215, %v1211
      %v1456 = vpack.c.b16 %v1220, %v1216
      %v1457 = vpack.c.b16 %v1221, %v1217
      %v1458 = vpack.c.b16 %v1222, %v1218
      %v1459 = vpack.c.b16 %v1223, %v1219
      %v1460 = vpack.c.b16 %v1228, %v1224
      %v1461 = vpack.c.b16 %v1229, %v1225
      %v1462 = vpack.c.b16 %v1230, %v1226
      %v1463 = vpack.c.b16 %v1231, %v1227
      %v1464 = vpack.c.b16 %v1236, %v1232
      %v1465 = vpack.c.b16 %v1237, %v1233
      %v1466 = vpack.c.b16 %v1238, %v1234
      %v1467 = vpack.c.b16 %v1239, %v1235
      %v1468 = vpack.c.b16 %v1244, %v1240
      %v1469 = vpack.c.b16 %v1245, %v1241
      %v1470 = vpack.c.b16 %v1246, %v1242
      %v1471 = vpack.c.b16 %v1247, %v1243
      %1696 = vmatprep.subr.bf16.mxu0 %v1249
      %1697 = vmatpush1.bf16.msra.mxu0 %v1248
      %1698 = vmatprep.subr.bf16.mxu0 %v1253
      %1699 = vmatpush1.bf16.msra.mxu0 %v1252
      %1700 = vmatprep.subr.bf16.mxu0 %v1257
      %1701 = vmatpush1.bf16.msra.mxu0 %v1256
      %1702 = vmatprep.subr.bf16.mxu0 %v1261
      %1703 = vmatpush1.bf16.msra.mxu0 %v1260
      %1704 = vmatprep.subr.bf16.mxu0 %v1265
      %1705 = vmatpush1.bf16.msra.mxu0 %v1264
      %1706 = vmatprep.subr.bf16.mxu0 %v1269
      %1707 = vmatpush1.bf16.msra.mxu0 %v1268
      %1708 = vmatprep.subr.bf16.mxu0 %v1273
      %1709 = vmatpush1.bf16.msra.mxu0 %v1272
      %1710 = vmatprep.subr.bf16.mxu0 %v1277
      %1711 = vmatpush1.bf16.msra.mxu0 %v1276
      %1712 = vmatprep.subr.bf16.mxu0 %v1281
      %1713 = vmatpush1.bf16.msra.mxu0 %v1280
      %1714 = vmatprep.subr.bf16.mxu0 %v1285
      %1715 = vmatpush1.bf16.msra.mxu0 %v1284
      %1716 = vmatprep.subr.bf16.mxu0 %v1289
      %1717 = vmatpush1.bf16.msra.mxu0 %v1288
      %1718 = vmatprep.subr.bf16.mxu0 %v1293
      %1719 = vmatpush1.bf16.msra.mxu0 %v1292
      %1720 = vmatprep.subr.bf16.mxu0 %v1297
      %1721 = vmatpush1.bf16.msra.mxu0 %v1296
      %1722 = vmatprep.subr.bf16.mxu0 %v1301
      %1723 = vmatpush1.bf16.msra.mxu0 %v1300
      %1724 = vmatprep.subr.bf16.mxu0 %v1305
      %1725 = vmatpush1.bf16.msra.mxu0 %v1304
      %1726 = vmatprep.subr.bf16.mxu0 %v1309
      %1727 = vmatpush1.bf16.msra.mxu0 %v1308
      %1728 = vmatprep.mubr.bf16.mxu0 %v563
      %1729 = vmatmul.mubr.bf16.gmra.mrb[0].mxu0 %v562
      %v1730 = vpop.f32.mrb[0].mxu0
      %v1731 = vadd.f32 %v523, %v1730
      %v1732 = vpop.f32.mrb[0].mxu0
      %v1733 = vadd.f32 %v527, %v1732
      %v1734 = vpop.f32.mrb[0].mxu0
      %v1735 = vadd.f32 %v523, %v1734
      %v1736 = vpop.f32.mrb[0].mxu0
      %v1737 = vadd.f32 %v527, %v1736
      %1738 = vdwg.mxu0
      %1739 = vmatprep.subr.bf16.mxu0 %v1313
      %1740 = vmatpush1.bf16.msra.mxu0 %v1312
      %1741 = vmatprep.subr.bf16.mxu0 %v1317
      %1742 = vmatpush1.bf16.msra.mxu0 %v1316
      %1743 = vmatprep.subr.bf16.mxu0 %v1321
      %1744 = vmatpush1.bf16.msra.mxu0 %v1320
      %1745 = vmatprep.subr.bf16.mxu0 %v1325
      %1746 = vmatpush1.bf16.msra.mxu0 %v1324
      %1747 = vmatprep.subr.bf16.mxu0 %v1329
      %1748 = vmatpush1.bf16.msra.mxu0 %v1328
      %1749 = vmatprep.subr.bf16.mxu0 %v1333
      %1750 = vmatpush1.bf16.msra.mxu0 %v1332
      %1751 = vmatprep.subr.bf16.mxu0 %v1337
      %1752 = vmatpush1.bf16.msra.mxu0 %v1336
      %1753 = vmatprep.subr.bf16.mxu0 %v1341
      %1754 = vmatpush1.bf16.msra.mxu0 %v1340
      %1755 = vmatprep.subr.bf16.mxu0 %v1345
      %1756 = vmatpush1.bf16.msra.mxu0 %v1344
      %1757 = vmatprep.subr.bf16.mxu0 %v1349
      %1758 = vmatpush1.bf16.msra.mxu0 %v1348
      %1759 = vmatprep.subr.bf16.mxu0 %v1353
      %1760 = vmatpush1.bf16.msra.mxu0 %v1352
      %1761 = vmatprep.subr.bf16.mxu0 %v1357
      %1762 = vmatpush1.bf16.msra.mxu0 %v1356
      %1763 = vmatprep.subr.bf16.mxu0 %v1361
      %1764 = vmatpush1.bf16.msra.mxu0 %v1360
      %1765 = vmatprep.subr.bf16.mxu0 %v1365
      %1766 = vmatpush1.bf16.msra.mxu0 %v1364
      %1767 = vmatprep.subr.bf16.mxu0 %v1369
      %1768 = vmatpush1.bf16.msra.mxu0 %v1368
      %1769 = vmatprep.subr.bf16.mxu0 %v1373
      %1770 = vmatpush1.bf16.msra.mxu0 %v1372
      %1771 = vmatprep.mubr.bf16.mxu0 %v565
      %1772 = vmatmul.mubr.bf16.gmra.mrb[0].mxu0 %v564
      %v1773 = vpop.f32.mrb[0].mxu0
      %v1774 = vadd.f32 %v1731, %v1773
      %v1775 = vpop.f32.mrb[0].mxu0
      %v1776 = vadd.f32 %v1733, %v1775
      %v1777 = vpop.f32.mrb[0].mxu0
      %v1778 = vadd.f32 %v1735, %v1777
      %v1779 = vpop.f32.mrb[0].mxu0
      %v1780 = vadd.f32 %v1737, %v1779
      %1781 = vdwg.mxu0
      %1782 = vmatprep.subr.bf16.mxu0 %v1377
      %1783 = vmatpush1.bf16.msra.mxu0 %v1376
      %1784 = vmatprep.subr.bf16.mxu0 %v1381
      %1785 = vmatpush1.bf16.msra.mxu0 %v1380
      %1786 = vmatprep.subr.bf16.mxu0 %v1385
      %1787 = vmatpush1.bf16.msra.mxu0 %v1384
      %1788 = vmatprep.subr.bf16.mxu0 %v1389
      %1789 = vmatpush1.bf16.msra.mxu0 %v1388
      %1790 = vmatprep.subr.bf16.mxu0 %v1393
      %1791 = vmatpush1.bf16.msra.mxu0 %v1392
      %1792 = vmatprep.subr.bf16.mxu0 %v1397
      %1793 = vmatpush1.bf16.msra.mxu0 %v1396
      %1794 = vmatprep.subr.bf16.mxu0 %v1401
      %1795 = vmatpush1.bf16.msra.mxu0 %v1400
      %1796 = vmatprep.subr.bf16.mxu0 %v1405
      %1797 = vmatpush1.bf16.msra.mxu0 %v1404
      %1798 = vmatprep.subr.bf16.mxu0 %v1409
      %1799 = vmatpush1.bf16.msra.mxu0 %v1408
      %1800 = vmatprep.subr.bf16.mxu0 %v1413
      %1801 = vmatpush1.bf16.msra.mxu0 %v1412
      %1802 = vmatprep.subr.bf16.mxu0 %v1417
      %1803 = vmatpush1.bf16.msra.mxu0 %v1416
      %1804 = vmatprep.subr.bf16.mxu0 %v1421
      %1805 = vmatpush1.bf16.msra.mxu0 %v1420
      %1806 = vmatprep.subr.bf16.mxu0 %v1425
      %1807 = vmatpush1.bf16.msra.mxu0 %v1424
      %1808 = vmatprep.subr.bf16.mxu0 %v1429
      %1809 = vmatpush1.bf16.msra.mxu0 %v1428
      %1810 = vmatprep.subr.bf16.mxu0 %v1433
      %1811 = vmatpush1.bf16.msra.mxu0 %v1432
      %1812 = vmatprep.subr.bf16.mxu0 %v1437
      %1813 = vmatpush1.bf16.msra.mxu0 %v1436
      %1814 = vmatprep.mubr.bf16.mxu0 %v567
      %1815 = vmatmul.mubr.bf16.gmra.mrb[0].mxu0 %v566
      %v1816 = vpop.f32.mrb[0].mxu0
      %v1817 = vadd.f32 %v1774, %v1816
      %v1818 = vpop.f32.mrb[0].mxu0
      %v1819 = vadd.f32 %v1776, %v1818
      %v1820 = vpop.f32.mrb[0].mxu0
      %v1821 = vadd.f32 %v1778, %v1820
      %v1822 = vpop.f32.mrb[0].mxu0
      %v1823 = vadd.f32 %v1780, %v1822
      %1824 = vdwg.mxu0
      %1825 = vmatprep.subr.bf16.mxu0 %v1441
      %1826 = vmatpush1.bf16.msra.mxu0 %v1440
      %1827 = vmatprep.subr.bf16.mxu0 %v1445
      %1828 = vmatpush1.bf16.msra.mxu0 %v1444
      %1829 = vmatprep.subr.bf16.mxu0 %v1449
      %1830 = vmatpush1.bf16.msra.mxu0 %v1448
      %1831 = vmatprep.subr.bf16.mxu0 %v1453
      %1832 = vmatpush1.bf16.msra.mxu0 %v1452
      %1833 = vmatprep.subr.bf16.mxu0 %v1457
      %1834 = vmatpush1.bf16.msra.mxu0 %v1456
      %1835 = vmatprep.subr.bf16.mxu0 %v1461
      %1836 = vmatpush1.bf16.msra.mxu0 %v1460
      %1837 = vmatprep.subr.bf16.mxu0 %v1465
      %1838 = vmatpush1.bf16.msra.mxu0 %v1464
      %1839 = vmatprep.subr.bf16.mxu0 %v1469
      %1840 = vmatpush1.bf16.msra.mxu0 %v1468
      %1841 = vmatprep.subr.bf16.mxu0 0
      %1842 = vmatpush1.bf16.msra.mxu0 0
      %1843 = vmatprep.subr.bf16.mxu0 0
      %1844 = vmatpush1.bf16.msra.mxu0 0
      %1845 = vmatprep.subr.bf16.mxu0 0
      %1846 = vmatpush1.bf16.msra.mxu0 0
      %1847 = vmatprep.subr.bf16.mxu0 0
      %1848 = vmatpush1.bf16.msra.mxu0 0
      %1849 = vmatprep.subr.bf16.mxu0 0
      %1850 = vmatpush1.bf16.msra.mxu0 0
      %1851 = vmatprep.subr.bf16.mxu0 0
      %1852 = vmatpush1.bf16.msra.mxu0 0
      %1853 = vmatprep.subr.bf16.mxu0 0
      %1854 = vmatpush1.bf16.msra.mxu0 0
      %1855 = vmatprep.subr.bf16.mxu0 0
      %1856 = vmatpush1.bf16.msra.mxu0 0
      %1857 = vmatprep.mubr.bf16.mxu0 0
      %1858 = vmatmul.mubr.bf16.gmra.mrb[0].mxu0 %v568
      %v1859 = vpop.f32.mrb[0].mxu0
      %v1860 = vadd.f32 %v1817, %v1859
      %v1861 = vpop.f32.mrb[0].mxu0
      %v1862 = vadd.f32 %v1819, %v1861
      %v1863 = vpop.f32.mrb[0].mxu0
      %v1864 = vadd.f32 %v1821, %v1863
      %v1865 = vpop.f32.mrb[0].mxu0
      %v1866 = vadd.f32 %v1823, %v1865
      %1867 = vdwg.mxu0
      %1868 = vmatprep.subr.bf16.mxu0 %v1251
      %1869 = vmatpush1.bf16.msra.mxu0 %v1250
      %1870 = vmatprep.subr.bf16.mxu0 %v1255
      %1871 = vmatpush1.bf16.msra.mxu0 %v1254
      %1872 = vmatprep.subr.bf16.mxu0 %v1259
      %1873 = vmatpush1.bf16.msra.mxu0 %v1258
      %1874 = vmatprep.subr.bf16.mxu0 %v1263
      %1875 = vmatpush1.bf16.msra.mxu0 %v1262
      %1876 = vmatprep.subr.bf16.mxu0 %v1267
      %1877 = vmatpush1.bf16.msra.mxu0 %v1266
      %1878 = vmatprep.subr.bf16.mxu0 %v1271
      %1879 = vmatpush1.bf16.msra.mxu0 %v1270
      %1880 = vmatprep.subr.bf16.mxu0 %v1275
      %1881 = vmatpush1.bf16.msra.mxu0 %v1274
      %1882 = vmatprep.subr.bf16.mxu0 %v1279
      %1883 = vmatpush1.bf16.msra.mxu0 %v1278
      %1884 = vmatprep.subr.bf16.mxu0 %v1283
      %1885 = vmatpush1.bf16.msra.mxu0 %v1282
      %1886 = vmatprep.subr.bf16.mxu0 %v1287
      %1887 = vmatpush1.bf16.msra.mxu0 %v1286
      %1888 = vmatprep.subr.bf16.mxu0 %v1291
      %1889 = vmatpush1.bf16.msra.mxu0 %v1290
      %1890 = vmatprep.subr.bf16.mxu0 %v1295
      %1891 = vmatpush1.bf16.msra.mxu0 %v1294
      %1892 = vmatprep.subr.bf16.mxu0 %v1299
      %1893 = vmatpush1.bf16.msra.mxu0 %v1298
      %1894 = vmatprep.subr.bf16.mxu0 %v1303
      %1895 = vmatpush1.bf16.msra.mxu0 %v1302
      %1896 = vmatprep.subr.bf16.mxu0 %v1307
      %1897 = vmatpush1.bf16.msra.mxu0 %v1306
      %1898 = vmatprep.subr.bf16.mxu0 %v1311
      %1899 = vmatpush1.bf16.msra.mxu0 %v1310
      %1900 = vmatprep.mubr.bf16.mxu0 %v563
      %1901 = vmatmul.mubr.bf16.gmra.mrb[0].mxu0 %v562
      %v1902 = vpop.f32.mrb[0].mxu0
      %v1903 = vadd.f32 %v531, %v1902
      %v1904 = vpop.f32.mrb[0].mxu0
      %v1905 = vadd.f32 %v535, %v1904
      %v1906 = vpop.f32.mrb[0].mxu0
      %v1907 = vadd.f32 %v531, %v1906
      %v1908 = vpop.f32.mrb[0].mxu0
      %v1909 = vadd.f32 %v535, %v1908
      %1910 = vdwg.mxu0
      %1911 = vmatprep.subr.bf16.mxu0 %v1315
      %1912 = vmatpush1.bf16.msra.mxu0 %v1314
      %1913 = vmatprep.subr.bf16.mxu0 %v1319
      %1914 = vmatpush1.bf16.msra.mxu0 %v1318
      %1915 = vmatprep.subr.bf16.mxu0 %v1323
      %1916 = vmatpush1.bf16.msra.mxu0 %v1322
      %1917 = vmatprep.subr.bf16.mxu0 %v1327
      %1918 = vmatpush1.bf16.msra.mxu0 %v1326
      %1919 = vmatprep.subr.bf16.mxu0 %v1331
      %1920 = vmatpush1.bf16.msra.mxu0 %v1330
      %1921 = vmatprep.subr.bf16.mxu0 %v1335
      %1922 = vmatpush1.bf16.msra.mxu0 %v1334
      %1923 = vmatprep.subr.bf16.mxu0 %v1339
      %1924 = vmatpush1.bf16.msra.mxu0 %v1338
      %1925 = vmatprep.subr.bf16.mxu0 %v1343
      %1926 = vmatpush1.bf16.msra.mxu0 %v1342
      %1927 = vmatprep.subr.bf16.mxu0 %v1347
      %1928 = vmatpush1.bf16.msra.mxu0 %v1346
      %1929 = vmatprep.subr.bf16.mxu0 %v1351
      %1930 = vmatpush1.bf16.msra.mxu0 %v1350
      %1931 = vmatprep.subr.bf16.mxu0 %v1355
      %1932 = vmatpush1.bf16.msra.mxu0 %v1354
      %1933 = vmatprep.subr.bf16.mxu0 %v1359
      %1934 = vmatpush1.bf16.msra.mxu0 %v1358
      %1935 = vmatprep.subr.bf16.mxu0 %v1363
      %1936 = vmatpush1.bf16.msra.mxu0 %v1362
      %1937 = vmatprep.subr.bf16.mxu0 %v1367
      %1938 = vmatpush1.bf16.msra.mxu0 %v1366
      %1939 = vmatprep.subr.bf16.mxu0 %v1371
      %1940 = vmatpush1.bf16.msra.mxu0 %v1370
      %1941 = vmatprep.subr.bf16.mxu0 %v1375
      %1942 = vmatpush1.bf16.msra.mxu0 %v1374
      %1943 = vmatprep.mubr.bf16.mxu0 %v565
      %1944 = vmatmul.mubr.bf16.gmra.mrb[0].mxu0 %v564
      %v1945 = vpop.f32.mrb[0].mxu0
      %v1946 = vadd.f32 %v1903, %v1945
      %v1947 = vpop.f32.mrb[0].mxu0
      %v1948 = vadd.f32 %v1905, %v1947
      %v1949 = vpop.f32.mrb[0].mxu0
      %v1950 = vadd.f32 %v1907, %v1949
      %v1951 = vpop.f32.mrb[0].mxu0
      %v1952 = vadd.f32 %v1909, %v1951
      %1953 = vdwg.mxu0
      %1954 = vmatprep.subr.bf16.mxu0 %v1379
      %1955 = vmatpush1.bf16.msra.mxu0 %v1378
      %1956 = vmatprep.subr.bf16.mxu0 %v1383
      %1957 = vmatpush1.bf16.msra.mxu0 %v1382
      %1958 = vmatprep.subr.bf16.mxu0 %v1387
      %1959 = vmatpush1.bf16.msra.mxu0 %v1386
      %1960 = vmatprep.subr.bf16.mxu0 %v1391
      %1961 = vmatpush1.bf16.msra.mxu0 %v1390
      %1962 = vmatprep.subr.bf16.mxu0 %v1395
      %1963 = vmatpush1.bf16.msra.mxu0 %v1394
      %1964 = vmatprep.subr.bf16.mxu0 %v1399
      %1965 = vmatpush1.bf16.msra.mxu0 %v1398
      %1966 = vmatprep.subr.bf16.mxu0 %v1403
      %1967 = vmatpush1.bf16.msra.mxu0 %v1402
      %1968 = vmatprep.subr.bf16.mxu0 %v1407
      %1969 = vmatpush1.bf16.msra.mxu0 %v1406
      %1970 = vmatprep.subr.bf16.mxu0 %v1411
      %1971 = vmatpush1.bf16.msra.mxu0 %v1410
      %1972 = vmatprep.subr.bf16.mxu0 %v1415
      %1973 = vmatpush1.bf16.msra.mxu0 %v1414
      %1974 = vmatprep.subr.bf16.mxu0 %v1419
      %1975 = vmatpush1.bf16.msra.mxu0 %v1418
      %1976 = vmatprep.subr.bf16.mxu0 %v1423
      %1977 = vmatpush1.bf16.msra.mxu0 %v1422
      %1978 = vmatprep.subr.bf16.mxu0 %v1427
      %1979 = vmatpush1.bf16.msra.mxu0 %v1426
      %1980 = vmatprep.subr.bf16.mxu0 %v1431
      %1981 = vmatpush1.bf16.msra.mxu0 %v1430
      %1982 = vmatprep.subr.bf16.mxu0 %v1435
      %1983 = vmatpush1.bf16.msra.mxu0 %v1434
      %1984 = vmatprep.subr.bf16.mxu0 %v1439
      %1985 = vmatpush1.bf16.msra.mxu0 %v1438
      %1986 = vmatprep.mubr.bf16.mxu0 %v567
      %1987 = vmatmul.mubr.bf16.gmra.mrb[0].mxu0 %v566
      %v1988 = vpop.f32.mrb[0].mxu0
      %v1989 = vadd.f32 %v1946, %v1988
      %v1990 = vpop.f32.mrb[0].mxu0
      %v1991 = vadd.f32 %v1948, %v1990
      %v1992 = vpop.f32.mrb[0].mxu0
      %v1993 = vadd.f32 %v1950, %v1992
      %v1994 = vpop.f32.mrb[0].mxu0
      %v1995 = vadd.f32 %v1952, %v1994
      %1996 = vdwg.mxu0
      %1997 = vmatprep.subr.bf16.mxu0 %v1443
      %1998 = vmatpush1.bf16.msra.mxu0 %v1442
      %1999 = vmatprep.subr.bf16.mxu0 %v1447
      %2000 = vmatpush1.bf16.msra.mxu0 %v1446
      %2001 = vmatprep.subr.bf16.mxu0 %v1451
      %2002 = vmatpush1.bf16.msra.mxu0 %v1450
      %2003 = vmatprep.subr.bf16.mxu0 %v1455
      %2004 = vmatpush1.bf16.msra.mxu0 %v1454
      %2005 = vmatprep.subr.bf16.mxu0 %v1459
      %2006 = vmatpush1.bf16.msra.mxu0 %v1458
      %2007 = vmatprep.subr.bf16.mxu0 %v1463
      %2008 = vmatpush1.bf16.msra.mxu0 %v1462
      %2009 = vmatprep.subr.bf16.mxu0 %v1467
      %2010 = vmatpush1.bf16.msra.mxu0 %v1466
      %2011 = vmatprep.subr.bf16.mxu0 %v1471
      %2012 = vmatpush1.bf16.msra.mxu0 %v1470
      %2013 = vmatprep.subr.bf16.mxu0 0
      %2014 = vmatpush1.bf16.msra.mxu0 0
      %2015 = vmatprep.subr.bf16.mxu0 0
      %2016 = vmatpush1.bf16.msra.mxu0 0
      %2017 = vmatprep.subr.bf16.mxu0 0
      %2018 = vmatpush1.bf16.msra.mxu0 0
      %2019 = vmatprep.subr.bf16.mxu0 0
      %2020 = vmatpush1.bf16.msra.mxu0 0
      %2021 = vmatprep.subr.bf16.mxu0 0
      %2022 = vmatpush1.bf16.msra.mxu0 0
      %2023 = vmatprep.subr.bf16.mxu0 0
      %2024 = vmatpush1.bf16.msra.mxu0 0
      %2025 = vmatprep.subr.bf16.mxu0 0
      %2026 = vmatpush1.bf16.msra.mxu0 0
      %2027 = vmatprep.subr.bf16.mxu0 0
      %2028 = vmatpush1.bf16.msra.mxu0 0
      %2029 = vmatprep.mubr.bf16.mxu0 0
      %2030 = vmatmul.mubr.bf16.gmra.mrb[0].mxu0 %v568
      %v2031 = vpop.f32.mrb[0].mxu0
      %v2032 = vadd.f32 %v1989, %v2031
      %v2033 = vpop.f32.mrb[0].mxu0
      %v2034 = vadd.f32 %v1991, %v2033
      %v2035 = vpop.f32.mrb[0].mxu0
      %v2036 = vadd.f32 %v1993, %v2035
      %v2037 = vpop.f32.mrb[0].mxu0
      %v2038 = vadd.f32 %v1995, %v2037
      %2039 = vdwg.mxu0
      %v2040 = vmax.f32 %v1860, 0.0
      %v2041 = vmax.f32 %v1862, 0.0
      %v2042 = vmax.f32 %v2032, 0.0
      %v2043 = vmax.f32 %v2034, 0.0
      %v2044 = vmax.f32 %v1864, 0.0
      %v2045 = vmax.f32 %v1866, 0.0
      %v2046 = vmax.f32 %v2036, 0.0
      %v2047 = vmax.f32 %v2038, 0.0
      %v2048 = vpack.c.bf16 %v2044, %v2040
      %v2049 = vpack.c.bf16 %v2045, %v2041
      %v2050 = vpack.c.bf16 %v2046, %v2042
      %v2051 = vpack.c.bf16 %v2047, %v2043
      %v2052 = vld [vmem:[%s3] sm:$0xff]
      %v2053 = vld [vmem:[%s3 + $0x8] sm:$0xff]
      %v2054 = vld [vmem:[%s3 + $0x10] sm:$0xff]
      %v2055 = vld [vmem:[%s3 + $0x18] sm:$0xff]
      %v2056 = vld [vmem:[%s3 + $0x20] sm:$0xff]
      %v2057 = vld [vmem:[%s3 + $0x28] sm:$0xff]
      %v2058 = vld [vmem:[%s3 + $0x30] sm:$0xff]
      %v2059 = vld [vmem:[%s3 + $0x38] sm:$0xff]
      %v2060 = vld [vmem:[%s3 + $0x40] sm:$0xff]
      %v2061 = vld [vmem:[%s3 + $0x48] sm:$0xff]
      %v2062 = vld [vmem:[%s3 + $0x50] sm:$0xff]
      %v2063 = vld [vmem:[%s3 + $0x58] sm:$0xff]
      %v2064 = vld [vmem:[%s3 + $0x60] sm:$0xff]
      %v2065 = vld [vmem:[%s3 + $0x68] sm:$0xff]
      %v2066 = vld [vmem:[%s3 + $0x70] sm:$0xff]
      %v2067 = vld [vmem:[%s3 + $0x78] sm:$0xff]
      %v2068 = vld [vmem:[%s3 + $0x80] sm:$0xff]
      %v2069 = vld [vmem:[%s3 + $0x88] sm:$0xff]
      %v2070 = vld [vmem:[%s3 + $0x90] sm:$0xff]
      %v2071 = vld [vmem:[%s3 + $0x98] sm:$0xff]
      %v2072 = vld [vmem:[%s3 + $0xa0] sm:$0xff]
      %v2073 = vld [vmem:[%s3 + $0xa8] sm:$0xff]
      %v2074 = vld [vmem:[%s3 + $0xb0] sm:$0xff]
      %v2075 = vld [vmem:[%s3 + $0xb8] sm:$0xff]
      %v2076 = vld [vmem:[%s3 + $0xc0] sm:$0xff]
      %v2077 = vld [vmem:[%s3 + $0xc8] sm:$0xff]
      %v2078 = vld [vmem:[%s3 + $0xd0] sm:$0xff]
      %v2079 = vld [vmem:[%s3 + $0xd8] sm:$0xff]
      %v2080 = vld [vmem:[%s3 + $0xe0] sm:$0xff]
      %v2081 = vld [vmem:[%s3 + $0xe8] sm:$0xff]
      %v2082 = vld [vmem:[%s3 + $0xf0] sm:$0xff]
      %v2083 = vld [vmem:[%s3 + $0xf8] sm:$0xff]
      %v2084 = vld [vmem:[%s3 + $0x100] sm:$0xff]
      %v2085 = vld [vmem:[%s3 + $0x108] sm:$0xff]
      %v2086 = vld [vmem:[%s3 + $0x110] sm:$0xff]
      %v2087 = vld [vmem:[%s3 + $0x118] sm:$0xff]
      %v2088 = vld [vmem:[%s3 + $0x120] sm:$0xff]
      %v2089 = vld [vmem:[%s3 + $0x128] sm:$0xff]
      %v2090 = vld [vmem:[%s3 + $0x130] sm:$0xff]
      %v2091 = vld [vmem:[%s3 + $0x138] sm:$0xff]
      %v2092 = vld [vmem:[%s3 + $0x140] sm:$0xff]
      %v2093 = vld [vmem:[%s3 + $0x148] sm:$0xff]
      %v2094 = vld [vmem:[%s3 + $0x150] sm:$0xff]
      %v2095 = vld [vmem:[%s3 + $0x158] sm:$0xff]
      %v2096 = vld [vmem:[%s3 + $0x160] sm:$0xff]
      %v2097 = vld [vmem:[%s3 + $0x168] sm:$0xff]
      %v2098 = vld [vmem:[%s3 + $0x170] sm:$0xff]
      %v2099 = vld [vmem:[%s3 + $0x178] sm:$0xff]
      %v2100 = vld [vmem:[%s3 + $0x180] sm:$0xff]
      %v2101 = vld [vmem:[%s3 + $0x188] sm:$0xff]
      %v2102 = vld [vmem:[%s3 + $0x190] sm:$0xff]
      %v2103 = vld [vmem:[%s3 + $0x198] sm:$0xff]
      %v2104 = vld [vmem:[%s3 + $0x1a0] sm:$0xff]
      %v2105 = vld [vmem:[%s3 + $0x1a8] sm:$0xff]
      %v2106 = vld [vmem:[%s3 + $0x1b0] sm:$0xff]
      %v2107 = vld [vmem:[%s3 + $0x1b8] sm:$0xff]
      %v2108 = vld [vmem:[%s3 + $0x1c0] sm:$0xff]
      %v2109 = vld [vmem:[%s3 + $0x1c8] sm:$0xff]
      %v2110 = vld [vmem:[%s3 + $0x1d0] sm:$0xff]
      %v2111 = vld [vmem:[%s3 + $0x1d8] sm:$0xff]
      %v2112 = vld [vmem:[%s3 + $0x1e0] sm:$0xff]
      %v2113 = vld [vmem:[%s3 + $0x1e8] sm:$0xff]
      %v2114 = vld [vmem:[%s3 + $0x1f0] sm:$0xff]
      %v2115 = vld [vmem:[%s3 + $0x1f8] sm:$0xff]
      %v2116 = vld [vmem:[%s4] sm:$0x3]
      %v2118 = vlaneseq
      %v2119 = vshrl.u32 %v2118, 7
      %v2120 = vsub.s32 0, %v2119
      %v2121 = vrot.slane %v2116, %v2120
      %v2122 = vlaneseq
      %v2123 = vshrl.u32 %v2122, 7
      %v2124 = vsub.s32 1, %v2123
      %v2125 = vrot.slane %v2116, %v2124
      %v2192 = vunpack.c.l.b16 %v2052
      %v2193 = vunpack.c.h.b16 %v2052
      %v2194 = vunpack.c.l.b16 %v2053
      %v2195 = vunpack.c.h.b16 %v2053
      %v2196 = vunpack.c.l.b16 %v2054
      %v2197 = vunpack.c.h.b16 %v2054
      %v2198 = vunpack.c.l.b16 %v2055
      %v2199 = vunpack.c.h.b16 %v2055
      %v2200 = vunpack.c.l.b16 %v2056
      %v2201 = vunpack.c.h.b16 %v2056
      %v2202 = vunpack.c.l.b16 %v2057
      %v2203 = vunpack.c.h.b16 %v2057
      %v2204 = vunpack.c.l.b16 %v2058
      %v2205 = vunpack.c.h.b16 %v2058
      %v2206 = vunpack.c.l.b16 %v2059
      %v2207 = vunpack.c.h.b16 %v2059
      %v2208 = vunpack.c.l.b16 %v2060
      %v2209 = vunpack.c.h.b16 %v2060
      %v2210 = vunpack.c.l.b16 %v2061
      %v2211 = vunpack.c.h.b16 %v2061
      %v2212 = vunpack.c.l.b16 %v2062
      %v2213 = vunpack.c.h.b16 %v2062
      %v2214 = vunpack.c.l.b16 %v2063
      %v2215 = vunpack.c.h.b16 %v2063
      %v2216 = vunpack.c.l.b16 %v2064
      %v2217 = vunpack.c.h.b16 %v2064
      %v2218 = vunpack.c.l.b16 %v2065
      %v2219 = vunpack.c.h.b16 %v2065
      %v2220 = vunpack.c.l.b16 %v2066
      %v2221 = vunpack.c.h.b16 %v2066
      %v2222 = vunpack.c.l.b16 %v2067
      %v2223 = vunpack.c.h.b16 %v2067
      %v2224 = vunpack.c.l.b16 %v2068
      %v2225 = vunpack.c.h.b16 %v2068
      %v2226 = vunpack.c.l.b16 %v2069
      %v2227 = vunpack.c.h.b16 %v2069
      %v2228 = vunpack.c.l.b16 %v2070
      %v2229 = vunpack.c.h.b16 %v2070
      %v2230 = vunpack.c.l.b16 %v2071
      %v2231 = vunpack.c.h.b16 %v2071
      %v2232 = vunpack.c.l.b16 %v2072
      %v2233 = vunpack.c.h.b16 %v2072
      %v2234 = vunpack.c.l.b16 %v2073
      %v2235 = vunpack.c.h.b16 %v2073
      %v2236 = vunpack.c.l.b16 %v2074
      %v2237 = vunpack.c.h.b16 %v2074
      %v2238 = vunpack.c.l.b16 %v2075
      %v2239 = vunpack.c.h.b16 %v2075
      %v2240 = vunpack.c.l.b16 %v2076
      %v2241 = vunpack.c.h.b16 %v2076
      %v2242 = vunpack.c.l.b16 %v2077
      %v2243 = vunpack.c.h.b16 %v2077
      %v2244 = vunpack.c.l.b16 %v2078
      %v2245 = vunpack.c.h.b16 %v2078
      %v2246 = vunpack.c.l.b16 %v2079
      %v2247 = vunpack.c.h.b16 %v2079
      %v2248 = vunpack.c.l.b16 %v2080
      %v2249 = vunpack.c.h.b16 %v2080
      %v2250 = vunpack.c.l.b16 %v2081
      %v2251 = vunpack.c.h.b16 %v2081
      %v2252 = vunpack.c.l.b16 %v2082
      %v2253 = vunpack.c.h.b16 %v2082
      %v2254 = vunpack.c.l.b16 %v2083
      %v2255 = vunpack.c.h.b16 %v2083
      %v2256 = vunpack.c.l.b16 %v2084
      %v2257 = vunpack.c.h.b16 %v2084
      %v2258 = vunpack.c.l.b16 %v2085
      %v2259 = vunpack.c.h.b16 %v2085
      %v2260 = vunpack.c.l.b16 %v2086
      %v2261 = vunpack.c.h.b16 %v2086
      %v2262 = vunpack.c.l.b16 %v2087
      %v2263 = vunpack.c.h.b16 %v2087
      %v2264 = vunpack.c.l.b16 %v2088
      %v2265 = vunpack.c.h.b16 %v2088
      %v2266 = vunpack.c.l.b16 %v2089
      %v2267 = vunpack.c.h.b16 %v2089
      %v2268 = vunpack.c.l.b16 %v2090
      %v2269 = vunpack.c.h.b16 %v2090
      %v2270 = vunpack.c.l.b16 %v2091
      %v2271 = vunpack.c.h.b16 %v2091
      %v2272 = vunpack.c.l.b16 %v2092
      %v2273 = vunpack.c.h.b16 %v2092
      %v2274 = vunpack.c.l.b16 %v2093
      %v2275 = vunpack.c.h.b16 %v2093
      %v2276 = vunpack.c.l.b16 %v2094
      %v2277 = vunpack.c.h.b16 %v2094
      %v2278 = vunpack.c.l.b16 %v2095
      %v2279 = vunpack.c.h.b16 %v2095
      %v2280 = vunpack.c.l.b16 %v2096
      %v2281 = vunpack.c.h.b16 %v2096
      %v2282 = vunpack.c.l.b16 %v2097
      %v2283 = vunpack.c.h.b16 %v2097
      %v2284 = vunpack.c.l.b16 %v2098
      %v2285 = vunpack.c.h.b16 %v2098
      %v2286 = vunpack.c.l.b16 %v2099
      %v2287 = vunpack.c.h.b16 %v2099
      %v2288 = vunpack.c.l.b16 %v2100
      %v2289 = vunpack.c.h.b16 %v2100
      %v2290 = vunpack.c.l.b16 %v2101
      %v2291 = vunpack.c.h.b16 %v2101
      %v2292 = vunpack.c.l.b16 %v2102
      %v2293 = vunpack.c.h.b16 %v2102
      %v2294 = vunpack.c.l.b16 %v2103
      %v2295 = vunpack.c.h.b16 %v2103
      %v2296 = vunpack.c.l.b16 %v2104
      %v2297 = vunpack.c.h.b16 %v2104
      %v2298 = vunpack.c.l.b16 %v2105
      %v2299 = vunpack.c.h.b16 %v2105
      %v2300 = vunpack.c.l.b16 %v2106
      %v2301 = vunpack.c.h.b16 %v2106
      %v2302 = vunpack.c.l.b16 %v2107
      %v2303 = vunpack.c.h.b16 %v2107
      %v2304 = vunpack.c.l.b16 %v2108
      %v2305 = vunpack.c.h.b16 %v2108
      %v2306 = vunpack.c.l.b16 %v2109
      %v2307 = vunpack.c.h.b16 %v2109
      %v2308 = vunpack.c.l.b16 %v2110
      %v2309 = vunpack.c.h.b16 %v2110
      %v2310 = vunpack.c.l.b16 %v2111
      %v2311 = vunpack.c.h.b16 %v2111
      %v2312 = vunpack.c.l.b16 %v2112
      %v2313 = vunpack.c.h.b16 %v2112
      %v2314 = vunpack.c.l.b16 %v2113
      %v2315 = vunpack.c.h.b16 %v2113
      %v2316 = vunpack.c.l.b16 %v2114
      %v2317 = vunpack.c.h.b16 %v2114
      %v2318 = vunpack.c.l.b16 %v2115
      %v2319 = vunpack.c.h.b16 %v2115
      %v2320 = vpack.c.b16 %v2194, %v2192
      %v2321 = vpack.c.b16 %v2195, %v2193
      %v2322 = vpack.c.b16 %v2198, %v2196
      %v2323 = vpack.c.b16 %v2199, %v2197
      %v2324 = vpack.c.b16 %v2202, %v2200
      %v2325 = vpack.c.b16 %v2203, %v2201
      %v2326 = vpack.c.b16 %v2206, %v2204
      %v2327 = vpack.c.b16 %v2207, %v2205
      %v2328 = vpack.c.b16 %v2210, %v2208
      %v2329 = vpack.c.b16 %v2211, %v2209
      %v2330 = vpack.c.b16 %v2214, %v2212
      %v2331 = vpack.c.b16 %v2215, %v2213
      %v2332 = vpack.c.b16 %v2218, %v2216
      %v2333 = vpack.c.b16 %v2219, %v2217
      %v2334 = vpack.c.b16 %v2222, %v2220
      %v2335 = vpack.c.b16 %v2223, %v2221
      %v2336 = vpack.c.b16 %v2226, %v2224
      %v2337 = vpack.c.b16 %v2227, %v2225
      %v2338 = vpack.c.b16 %v2230, %v2228
      %v2339 = vpack.c.b16 %v2231, %v2229
      %v2340 = vpack.c.b16 %v2234, %v2232
      %v2341 = vpack.c.b16 %v2235, %v2233
      %v2342 = vpack.c.b16 %v2238, %v2236
      %v2343 = vpack.c.b16 %v2239, %v2237
      %v2344 = vpack.c.b16 %v2242, %v2240
      %v2345 = vpack.c.b16 %v2243, %v2241
      %v2346 = vpack.c.b16 %v2246, %v2244
      %v2347 = vpack.c.b16 %v2247, %v2245
      %v2348 = vpack.c.b16 %v2250, %v2248
      %v2349 = vpack.c.b16 %v2251, %v2249
      %v2350 = vpack.c.b16 %v2254, %v2252
      %v2351 = vpack.c.b16 %v2255, %v2253
      %v2352 = vpack.c.b16 %v2258, %v2256
      %v2353 = vpack.c.b16 %v2259, %v2257
      %v2354 = vpack.c.b16 %v2262, %v2260
      %v2355 = vpack.c.b16 %v2263, %v2261
      %v2356 = vpack.c.b16 %v2266, %v2264
      %v2357 = vpack.c.b16 %v2267, %v2265
      %v2358 = vpack.c.b16 %v2270, %v2268
      %v2359 = vpack.c.b16 %v2271, %v2269
      %v2360 = vpack.c.b16 %v2274, %v2272
      %v2361 = vpack.c.b16 %v2275, %v2273
      %v2362 = vpack.c.b16 %v2278, %v2276
      %v2363 = vpack.c.b16 %v2279, %v2277
      %v2364 = vpack.c.b16 %v2282, %v2280
      %v2365 = vpack.c.b16 %v2283, %v2281
      %v2366 = vpack.c.b16 %v2286, %v2284
      %v2367 = vpack.c.b16 %v2287, %v2285
      %v2368 = vpack.c.b16 %v2290, %v2288
      %v2369 = vpack.c.b16 %v2291, %v2289
      %v2370 = vpack.c.b16 %v2294, %v2292
      %v2371 = vpack.c.b16 %v2295, %v2293
      %v2372 = vpack.c.b16 %v2298, %v2296
      %v2373 = vpack.c.b16 %v2299, %v2297
      %v2374 = vpack.c.b16 %v2302, %v2300
      %v2375 = vpack.c.b16 %v2303, %v2301
      %v2376 = vpack.c.b16 %v2306, %v2304
      %v2377 = vpack.c.b16 %v2307, %v2305
      %v2378 = vpack.c.b16 %v2310, %v2308
      %v2379 = vpack.c.b16 %v2311, %v2309
      %v2380 = vpack.c.b16 %v2314, %v2312
      %v2381 = vpack.c.b16 %v2315, %v2313
      %v2382 = vpack.c.b16 %v2318, %v2316
      %v2383 = vpack.c.b16 %v2319, %v2317
      %2448 = vmatprep.subr.bf16.mxu0 %v2321
      %2449 = vmatpush1.bf16.msra.mxu0 %v2320
      %2450 = vmatprep.subr.bf16.mxu0 %v2323
      %2451 = vmatpush1.bf16.msra.mxu0 %v2322
      %2452 = vmatprep.subr.bf16.mxu0 %v2325
      %2453 = vmatpush1.bf16.msra.mxu0 %v2324
      %2454 = vmatprep.subr.bf16.mxu0 %v2327
      %2455 = vmatpush1.bf16.msra.mxu0 %v2326
      %2456 = vmatprep.subr.bf16.mxu0 %v2329
      %2457 = vmatpush1.bf16.msra.mxu0 %v2328
      %2458 = vmatprep.subr.bf16.mxu0 %v2331
      %2459 = vmatpush1.bf16.msra.mxu0 %v2330
      %2460 = vmatprep.subr.bf16.mxu0 %v2333
      %2461 = vmatpush1.bf16.msra.mxu0 %v2332
      %2462 = vmatprep.subr.bf16.mxu0 %v2335
      %2463 = vmatpush1.bf16.msra.mxu0 %v2334
      %2464 = vmatprep.subr.bf16.mxu0 %v2337
      %2465 = vmatpush1.bf16.msra.mxu0 %v2336
      %2466 = vmatprep.subr.bf16.mxu0 %v2339
      %2467 = vmatpush1.bf16.msra.mxu0 %v2338
      %2468 = vmatprep.subr.bf16.mxu0 %v2341
      %2469 = vmatpush1.bf16.msra.mxu0 %v2340
      %2470 = vmatprep.subr.bf16.mxu0 %v2343
      %2471 = vmatpush1.bf16.msra.mxu0 %v2342
      %2472 = vmatprep.subr.bf16.mxu0 %v2345
      %2473 = vmatpush1.bf16.msra.mxu0 %v2344
      %2474 = vmatprep.subr.bf16.mxu0 %v2347
      %2475 = vmatpush1.bf16.msra.mxu0 %v2346
      %2476 = vmatprep.subr.bf16.mxu0 %v2349
      %2477 = vmatpush1.bf16.msra.mxu0 %v2348
      %2478 = vmatprep.subr.bf16.mxu0 %v2351
      %2479 = vmatpush1.bf16.msra.mxu0 %v2350
      %2480 = vmatprep.mubr.bf16.mxu0 %v2049
      %2481 = vmatmul.mubr.bf16.gmra.mrb[0].mxu0 %v2048
      %v2482 = vpop.f32.mrb[0].mxu0
      %v2483 = vadd.f32 %v2121, %v2482
      %v2484 = vpop.f32.mrb[0].mxu0
      %v2485 = vadd.f32 %v2125, %v2484
      %v2486 = vpop.f32.mrb[0].mxu0
      %v2487 = vadd.f32 %v2121, %v2486
      %v2488 = vpop.f32.mrb[0].mxu0
      %v2489 = vadd.f32 %v2125, %v2488
      %2490 = vdwg.mxu0
      %2491 = vmatprep.subr.bf16.mxu0 %v2353
      %2492 = vmatpush1.bf16.msra.mxu0 %v2352
      %2493 = vmatprep.subr.bf16.mxu0 %v2355
      %2494 = vmatpush1.bf16.msra.mxu0 %v2354
      %2495 = vmatprep.subr.bf16.mxu0 %v2357
      %2496 = vmatpush1.bf16.msra.mxu0 %v2356
      %2497 = vmatprep.subr.bf16.mxu0 %v2359
      %2498 = vmatpush1.bf16.msra.mxu0 %v2358
      %2499 = vmatprep.subr.bf16.mxu0 %v2361
      %2500 = vmatpush1.bf16.msra.mxu0 %v2360
      %2501 = vmatprep.subr.bf16.mxu0 %v2363
      %2502 = vmatpush1.bf16.msra.mxu0 %v2362
      %2503 = vmatprep.subr.bf16.mxu0 %v2365
      %2504 = vmatpush1.bf16.msra.mxu0 %v2364
      %2505 = vmatprep.subr.bf16.mxu0 %v2367
      %2506 = vmatpush1.bf16.msra.mxu0 %v2366
      %2507 = vmatprep.subr.bf16.mxu0 %v2369
      %2508 = vmatpush1.bf16.msra.mxu0 %v2368
      %2509 = vmatprep.subr.bf16.mxu0 %v2371
      %2510 = vmatpush1.bf16.msra.mxu0 %v2370
      %2511 = vmatprep.subr.bf16.mxu0 %v2373
      %2512 = vmatpush1.bf16.msra.mxu0 %v2372
      %2513 = vmatprep.subr.bf16.mxu0 %v2375
      %2514 = vmatpush1.bf16.msra.mxu0 %v2374
      %2515 = vmatprep.subr.bf16.mxu0 %v2377
      %2516 = vmatpush1.bf16.msra.mxu0 %v2376
      %2517 = vmatprep.subr.bf16.mxu0 %v2379
      %2518 = vmatpush1.bf16.msra.mxu0 %v2378
      %2519 = vmatprep.subr.bf16.mxu0 %v2381
      %2520 = vmatpush1.bf16.msra.mxu0 %v2380
      %2521 = vmatprep.subr.bf16.mxu0 %v2383
      %2522 = vmatpush1.bf16.msra.mxu0 %v2382
      %2523 = vmatprep.mubr.bf16.mxu0 %v2051
      %2524 = vmatmul.mubr.bf16.gmra.mrb[0].mxu0 %v2050
      %v2525 = vpop.f32.mrb[0].mxu0
      %v2526 = vadd.f32 %v2483, %v2525
      %v2527 = vpop.f32.mrb[0].mxu0
      %v2528 = vadd.f32 %v2485, %v2527
      %v2529 = vpop.f32.mrb[0].mxu0
      %v2530 = vadd.f32 %v2487, %v2529
      %v2531 = vpop.f32.mrb[0].mxu0
      %v2532 = vadd.f32 %v2489, %v2531
      %2533 = vdwg.mxu0
      %v2534 = vmax.f32 %v2526, 0.0
      %v2535 = vmax.f32 %v2528, 0.0
      %v2536 = vmax.f32 %v2530, 0.0
      %v2537 = vmax.f32 %v2532, 0.0
      %v2538 = vpack.c.bf16 %v2536, %v2534
      %v2539 = vpack.c.bf16 %v2537, %v2535
      %v2540 = vld [vmem:[%s5] sm:$0xf]
      %v2541 = vld [vmem:[%s5 + $0x4] sm:$0xf]
      %v2542 = vld [vmem:[%s5 + $0x8] sm:$0xf]
      %v2543 = vld [vmem:[%s5 + $0xc] sm:$0xf]
      %v2544 = vld [vmem:[%s5 + $0x10] sm:$0xf]
      %v2545 = vld [vmem:[%s5 + $0x14] sm:$0xf]
      %v2546 = vld [vmem:[%s5 + $0x18] sm:$0xf]
      %v2547 = vld [vmem:[%s5 + $0x1c] sm:$0xf]
      %v2548 = vld [vmem:[%s5 + $0x20] sm:$0xf]
      %v2549 = vld [vmem:[%s5 + $0x24] sm:$0xf]
      %v2550 = vld [vmem:[%s5 + $0x28] sm:$0xf]
      %v2551 = vld [vmem:[%s5 + $0x2c] sm:$0xf]
      %v2552 = vld [vmem:[%s5 + $0x30] sm:$0xf]
      %v2553 = vld [vmem:[%s5 + $0x34] sm:$0xf]
      %v2554 = vld [vmem:[%s5 + $0x38] sm:$0xf]
      %v2555 = vld [vmem:[%s5 + $0x3c] sm:$0xf]
      %v2556 = vld [vmem:[%s5 + $0x40] sm:$0xf]
      %v2557 = vld [vmem:[%s5 + $0x44] sm:$0xf]
      %v2558 = vld [vmem:[%s5 + $0x48] sm:$0xf]
      %v2559 = vld [vmem:[%s5 + $0x4c] sm:$0xf]
      %v2560 = vld [vmem:[%s5 + $0x50] sm:$0xf]
      %v2561 = vld [vmem:[%s5 + $0x54] sm:$0xf]
      %v2562 = vld [vmem:[%s5 + $0x58] sm:$0xf]
      %v2563 = vld [vmem:[%s5 + $0x5c] sm:$0xf]
      %v2564 = vld [vmem:[%s5 + $0x60] sm:$0xf]
      %v2565 = vld [vmem:[%s5 + $0x64] sm:$0xf]
      %v2566 = vld [vmem:[%s5 + $0x68] sm:$0xf]
      %v2567 = vld [vmem:[%s5 + $0x6c] sm:$0xf]
      %v2568 = vld [vmem:[%s5 + $0x70] sm:$0xf]
      %v2569 = vld [vmem:[%s5 + $0x74] sm:$0xf]
      %v2570 = vld [vmem:[%s5 + $0x78] sm:$0xf]
      %v2571 = vld [vmem:[%s5 + $0x7c] sm:$0xf]
      %v2572 = vld [vmem:[%s6] sm:$0x1]
      %v2574 = vlaneseq
      %v2575 = vshrl.u32 %v2574, 7
      %v2576 = vsub.s32 0, %v2575
      %v2577 = vrot.slane %v2572, %v2576
      %v2611 = vunpack.c.l.b16 %v2540
      %v2612 = vunpack.c.l.b16 %v2541
      %v2613 = vunpack.c.l.b16 %v2542
      %v2614 = vunpack.c.l.b16 %v2543
      %v2615 = vunpack.c.l.b16 %v2544
      %v2616 = vunpack.c.l.b16 %v2545
      %v2617 = vunpack.c.l.b16 %v2546
      %v2618 = vunpack.c.l.b16 %v2547
      %v2619 = vunpack.c.l.b16 %v2548
      %v2620 = vunpack.c.l.b16 %v2549
      %v2621 = vunpack.c.l.b16 %v2550
      %v2622 = vunpack.c.l.b16 %v2551
      %v2623 = vunpack.c.l.b16 %v2552
      %v2624 = vunpack.c.l.b16 %v2553
      %v2625 = vunpack.c.l.b16 %v2554
      %v2626 = vunpack.c.l.b16 %v2555
      %v2627 = vunpack.c.l.b16 %v2556
      %v2628 = vunpack.c.l.b16 %v2557
      %v2629 = vunpack.c.l.b16 %v2558
      %v2630 = vunpack.c.l.b16 %v2559
      %v2631 = vunpack.c.l.b16 %v2560
      %v2632 = vunpack.c.l.b16 %v2561
      %v2633 = vunpack.c.l.b16 %v2562
      %v2634 = vunpack.c.l.b16 %v2563
      %v2635 = vunpack.c.l.b16 %v2564
      %v2636 = vunpack.c.l.b16 %v2565
      %v2637 = vunpack.c.l.b16 %v2566
      %v2638 = vunpack.c.l.b16 %v2567
      %v2639 = vunpack.c.l.b16 %v2568
      %v2640 = vunpack.c.l.b16 %v2569
      %v2641 = vunpack.c.l.b16 %v2570
      %v2642 = vunpack.c.l.b16 %v2571
      %v2643 = vpack.c.b16 %v2612, %v2611
      %v2644 = vpack.c.b16 %v2614, %v2613
      %v2645 = vpack.c.b16 %v2616, %v2615
      %v2646 = vpack.c.b16 %v2618, %v2617
      %v2647 = vpack.c.b16 %v2620, %v2619
      %v2648 = vpack.c.b16 %v2622, %v2621
      %v2649 = vpack.c.b16 %v2624, %v2623
      %v2650 = vpack.c.b16 %v2626, %v2625
      %v2651 = vpack.c.b16 %v2628, %v2627
      %v2652 = vpack.c.b16 %v2630, %v2629
      %v2653 = vpack.c.b16 %v2632, %v2631
      %v2654 = vpack.c.b16 %v2634, %v2633
      %v2655 = vpack.c.b16 %v2636, %v2635
      %v2656 = vpack.c.b16 %v2638, %v2637
      %v2657 = vpack.c.b16 %v2640, %v2639
      %v2658 = vpack.c.b16 %v2642, %v2641
      %2675 = vmatprep.subr.bf16.mxu0 0
      %2676 = vmatpush1.bf16.msra.mxu0 %v2643
      %2677 = vmatprep.subr.bf16.mxu0 0
      %2678 = vmatpush1.bf16.msra.mxu0 %v2644
      %2679 = vmatprep.subr.bf16.mxu0 0
      %2680 = vmatpush1.bf16.msra.mxu0 %v2645
      %2681 = vmatprep.subr.bf16.mxu0 0
      %2682 = vmatpush1.bf16.msra.mxu0 %v2646
      %2683 = vmatprep.subr.bf16.mxu0 0
      %2684 = vmatpush1.bf16.msra.mxu0 %v2647
      %2685 = vmatprep.subr.bf16.mxu0 0
      %2686 = vmatpush1.bf16.msra.mxu0 %v2648
      %2687 = vmatprep.subr.bf16.mxu0 0
      %2688 = vmatpush1.bf16.msra.mxu0 %v2649
      %2689 = vmatprep.subr.bf16.mxu0 0
      %2690 = vmatpush1.bf16.msra.mxu0 %v2650
      %2691 = vmatprep.subr.bf16.mxu0 0
      %2692 = vmatpush1.bf16.msra.mxu0 %v2651
      %2693 = vmatprep.subr.bf16.mxu0 0
      %2694 = vmatpush1.bf16.msra.mxu0 %v2652
      %2695 = vmatprep.subr.bf16.mxu0 0
      %2696 = vmatpush1.bf16.msra.mxu0 %v2653
      %2697 = vmatprep.subr.bf16.mxu0 0
      %2698 = vmatpush1.bf16.msra.mxu0 %v2654
      %2699 = vmatprep.subr.bf16.mxu0 0
      %2700 = vmatpush1.bf16.msra.mxu0 %v2655
      %2701 = vmatprep.subr.bf16.mxu0 0
      %2702 = vmatpush1.bf16.msra.mxu0 %v2656
      %2703 = vmatprep.subr.bf16.mxu0 0
      %2704 = vmatpush1.bf16.msra.mxu0 %v2657
      %2705 = vmatprep.subr.bf16.mxu0 0
      %2706 = vmatpush1.bf16.msra.mxu0 %v2658
      %2707 = vmatprep.mubr.bf16.mxu0 %v2539
      %2708 = vmatmul.mubr.bf16.gmra.mrb[0].mxu0 %v2538
      %v2709 = vpop.f32.mrb[0].mxu0
      %v2710 = vadd.f32 %v2577, %v2709
      %v2711 = vpop.f32.mrb[0].mxu0
      %v2712 = vpop.f32.mrb[0].mxu0
      %v2713 = vadd.f32 %v2577, %v2712
      %v2714 = vpop.f32.mrb[0].mxu0
      %2715 = vdwg.mxu0
      %2716 = vst [vmem:[%s283] sm:$0xff] %v2710
      %2717 = vst [vmem:[%s283 + $0x8] sm:$0xff] %v2713
      %s2718 = smul.u32 2, %s18
      %p2719 = scmp.lt.s32.totalorder %s2718, 3
      %s2720 = scalar_select %p2719, %s2718, 3
      %s2721 = smul.addr %s2720, 8
      %s2722 = scalar_lea.vmem %s7, %s2721
      // Predicated region
      $region49: #{dbn_forward.1} parent=47 // pred_check
        %p2723 = pneg %p188
      $region50: #{dbn_forward.1} parent=47 // pred_check_branch
        %2725 = sbr.rel (%p2723) target = $region52
      $region51: #{dbn_forward.1} parent=47 // pred_region
        %s2726 = smul.u32 2, %s18
      $region52: #{dbn_forward.1} parent=47 // pred_fallthru
        _
    $region48: #{dbn_forward.1} parent=5 // pred_fallthru
      _
    %p2727 = scmp.le.s32.totalorder 2, %s13
    // Predicated region
    $region53: #{dbn_forward.1} parent=5 // pred_check
      %p2728 = pneg %p2727
    $region54: #{dbn_forward.1} parent=5 // pred_check_branch
      %2730 = sbr.rel (%p2728) target = $region56
    $region55: #{dbn_forward.1} parent=5 // pred_region
      %s2731 = ssub.s32 %s13, 2
      // Predicated region
      $region57: #{dbn_forward.1} parent=55 // pred_check
        %p2732 = pneg %p194
      $region58: #{dbn_forward.1} parent=55 // pred_check_branch
        %2734 = sbr.rel (%p2732) target = $region60
      $region59: #{dbn_forward.1} parent=55 // pred_region
        %s2735 = smul.u32 2, %s19
        %p2736 = scmp.lt.s32.totalorder %s2735, 3
        %s2737 = scalar_select %p2736, %s2735, 3
        %s2738 = smul.addr %s2737, 8
        %s2739 = scalar_lea.vmem %s7, %s2738
      $region60: #{dbn_forward.1} parent=55 // pred_fallthru
        _
    $region56: #{dbn_forward.1} parent=5 // pred_fallthru
      _
  $region6: #{dbn_forward.1} parent=0 // loop_footer
    %s17 = sadd.s32 1, %s13
  $region7: #{dbn_forward.1} parent=0 // loop_footer_branch
    %12 = sbr.rel target = $region3
  $region8: #{dbn_forward.1} parent=0 // loop_exit
    _

</llo_original>
